<compile_context>
chip_gen: v6e
topology: v6e:2x2x1
jax: 0.10.0
libtpu: 0.0.40
codegen_flags: <defaults>
</compile_context>

<pallas_src>
import jax
import jax.numpy as jnp
from jax import lax
from jax.experimental import pallas as pl
from jax.experimental.pallas import tpu as pltpu

EPS = 1e-5


def basic_block_kernel(xpad_ref, bw1_ref, g1_ref, b1_ref, bw2_ref, g2_ref, b2_ref,
                       sel_ref, selT_ref, out_ref, pad_ref):
    N, Hp, WC = xpad_ref.shape
    H = Hp - 2
    M = N * H                      # rows of the lane-dense activation matrix
    C = sel_ref.shape[1]
    Wd = WC // C                   # spatial width folded into the lane dim

    def conv3x3(src_ref, bw_ref):
        # 3x3 / stride 1 conv as 3 lane-dense matmuls: one per row tap dy.
        # W taps + W padding are inside the banded (WC, WC) weight.
        acc = jnp.zeros((M, WC), jnp.float32)
        for dy in range(3):
            rows = src_ref[:, dy:dy + H, :].reshape(M, WC)
            acc += jnp.dot(rows, bw_ref[dy], preferred_element_type=jnp.float32)
        return acc

    def batchnorm(y, g_ref, b_ref):
        # Training-mode BN, fused single pass: per-lane sum / sum-of-squares,
        # then fold the W positions of each channel via tiny MXU matmuls.
        cnt = jnp.float32(M * Wd)                                   # = N*H*W
        s_wc = jnp.sum(y, axis=0, keepdims=True)                    # (1, WC)
        ss_wc = jnp.sum(y * y, axis=0, keepdims=True)               # (1, WC)
        s_c = jnp.dot(s_wc, sel_ref[...], preferred_element_type=jnp.float32)
        ss_c = jnp.dot(ss_wc, sel_ref[...], preferred_element_type=jnp.float32)
        mean_c = s_c / cnt                                          # (1, C)
        var_c = ss_c / cnt - mean_c * mean_c                        # biased var
        inv_c = lax.rsqrt(var_c + EPS)
        mean_wc = jnp.dot(mean_c, selT_ref[...], preferred_element_type=jnp.float32)
        inv_wc = jnp.dot(inv_c, selT_ref[...], preferred_element_type=jnp.float32)
        return (y - mean_wc) * inv_wc * g_ref[...] + b_ref[...]

    # conv1 -> bn1 -> relu
    y = conv3x3(xpad_ref, bw1_ref)
    y = batchnorm(y, g1_ref, b1_ref)
    y = jnp.maximum(y, 0.0)

    # H-pad the intermediate: zero only the 2 halo rows per image (lane-dense
    # full-width stores), then store the interior. No full zero-fill.
    pad_ref[:, 0:1, :] = jnp.zeros((N, 1, WC), jnp.float32)
    pad_ref[:, H + 1:H + 2, :] = jnp.zeros((N, 1, WC), jnp.float32)
    pad_ref[:, 1:H + 1, :] = y.reshape(N, H, WC)

    # conv2 -> bn2
    y = conv3x3(pad_ref, bw2_ref)
    y = batchnorm(y, g2_ref, b2_ref)

    # residual add (identity = raw input, read lane-dense from the H-padded x) + relu
    identity = xpad_ref[:, 1:H + 1, :].reshape(M, WC)
    out_ref[...] = jnp.maximum(y + identity, 0.0)


def _make_banded(w, W):
    """PyTorch (Cout, Cin, 3, 3) -> (3, W*C, W*C) banded matmul weights.

    BW[dy][wi*C+ci, wo*C+co] = w[co, ci, dy, wi-wo+1] when |wi-wo| <= 1, else 0.
    Built as sum_dx kron(shift_dx, w[dy, dx]); zero-pad in W is implicit (no wrap).
    """
    C = w.shape[1]
    wt = jnp.transpose(w, (2, 3, 1, 0)).astype(jnp.float32)   # (dy, dx, Cin, Cout)
    mats = []
    for dy in range(3):
        bw = jnp.zeros((W * C, W * C), jnp.float32)
        for dx in range(3):
            shift = jnp.eye(W, k=1 - dx, dtype=jnp.float32)   # S[wi,wo]=1 iff wi=wo+dx-1
            bw = bw + jnp.kron(shift, wt[dy, dx])
        mats.append(bw)
    return jnp.stack(mats)


def basic_block(x_nchw, w1, gamma1, beta1, w2, gamma2, beta2):
    """x_nchw: (N, C, H, W) float32 (PyTorch convention). Returns (N, C, H, W)."""
    x = jnp.transpose(x_nchw, (0, 2, 3, 1)).astype(jnp.float32)   # -> NHWC
    N, H, W, C = x.shape
    WC = W * C
    M = N * H

    # Fuse W and C into the lane dim; pad H only (W padding lives in the band).
    xpad = jnp.pad(x.reshape(N, H, WC), ((0, 0), (1, 1), (0, 0)))

    bw1 = _make_banded(w1, W)
    bw2 = _make_banded(w2, W)

    # Channel <-> lane bookkeeping: sel[w*C+ci, c] = (ci == c).
    sel = jnp.tile(jnp.eye(C, dtype=jnp.float32), (W, 1))         # (WC, C)
    selT = jnp.transpose(sel)                                     # (C, WC)

    def lane_tile(v):   # per-channel BN affine -> per-lane (1, WC)
        return jnp.tile(v.astype(jnp.float32), W).reshape(1, WC)

    conv_flops = 2 * 3 * 2 * M * WC * WC
    bytes_acc = 4 * (N * (H + 2) * WC + 2 * 3 * WC * WC + M * WC
                     + 4 * WC + 2 * WC * C)

    vmem = pltpu.MemorySpace.VMEM
    out2d = pl.pallas_call(
        basic_block_kernel,
        out_shape=jax.ShapeDtypeStruct((M, WC), jnp.float32),
        in_specs=[pl.BlockSpec(memory_space=vmem)] * 9,
        out_specs=pl.BlockSpec(memory_space=vmem),
        scratch_shapes=[pltpu.VMEM((N, H + 2, WC), jnp.float32)],
        compiler_params=pltpu.CompilerParams(vmem_limit_bytes=32 << 20),
        cost_estimate=pl.CostEstimate(flops=conv_flops,
                                      transcendentals=2 * C,
                                      bytes_accessed=bytes_acc),
    )(xpad,
      bw1, lane_tile(gamma1), lane_tile(beta1),
      bw2, lane_tile(gamma2), lane_tile(beta2),
      sel, selT)

    out = out2d.reshape(N, H, W, C)
    return jnp.transpose(out, (0, 3, 1, 2))                       # back to NCHW


def ref_basic_block(x, w1, g1, b1, w2, g2, b2):
    """Pure-JAX reference (NCHW) for correctness checking."""
    def conv(x, w):
        return lax.conv_general_dilated(
            x, w, window_strides=(1, 1), padding=[(1, 1), (1, 1)],
            dimension_numbers=('NCHW', 'OIHW', 'NCHW'))

    def bn(y, g, b):
        mean = jnp.mean(y, axis=(0, 2, 3), keepdims=True)
        var = jnp.mean((y - mean) ** 2, axis=(0, 2, 3), keepdims=True)
        return ((y - mean) / jnp.sqrt(var + EPS)) * g.reshape(1, -1, 1, 1) \
            + b.reshape(1, -1, 1, 1)

    out = jax.nn.relu(bn(conv(x, w1), g1, b1))
    out = bn(conv(out, w2), g2, b2)
    return jax.nn.relu(out + x)


if __name__ == "__main__":
    # Small shapes consistent with BasicBlock(inplanes=planes=8, stride=1).
    # W*C = 16*8 = 128 -> the fused lane dim exactly fills a vreg row.
    N, C, H, W = 2, 8, 16, 16
    key = jax.random.PRNGKey(0)
    kx, kw1, kw2 = jax.random.split(key, 3)

    x = jax.random.normal(kx, (N, C, H, W), jnp.float32)

    # kaiming_normal_-style init: std = sqrt(2 / fan_in), fan_in = Cin * 3 * 3
    std = (2.0 / (C * 9)) ** 0.5
    w1 = std * jax.random.normal(kw1, (C, C, 3, 3), jnp.float32)
    w2 = std * jax.random.normal(kw2, (C, C, 3, 3), jnp.float32)

    # BatchNorm2d default affine params: weight=1, bias=0
    gamma1 = jnp.ones((C,), jnp.float32)
    beta1 = jnp.zeros((C,), jnp.float32)
    gamma2 = jnp.ones((C,), jnp.float32)
    beta2 = jnp.zeros((C,), jnp.float32)

    out = basic_block(x, w1, gamma1, beta1, w2, gamma2, beta2)
    out = jax.block_until_ready(out)

    ref = ref_basic_block(x, w1, gamma1, beta1, w2, gamma2, beta2)
    ref = jax.block_until_ready(ref)

    assert out.shape == (N, C, H, W)
    assert jnp.allclose(out, ref, atol=1e-4, rtol=1e-4), \
        f"max abs err {jnp.max(jnp.abs(out - ref))}"
    print("KERNEL_OK")
</pallas_src>

<mosaic_0001>
module attributes {stable_mosaic.version = 11 : i64} {
  func.func @basic_block_kernel(%arg0: memref<2x18x128xf32, #tpu.memory_space<vmem>>, %arg1: memref<3x128x128xf32, #tpu.memory_space<vmem>>, %arg2: memref<1x128xf32, #tpu.memory_space<vmem>>, %arg3: memref<1x128xf32, #tpu.memory_space<vmem>>, %arg4: memref<3x128x128xf32, #tpu.memory_space<vmem>>, %arg5: memref<1x128xf32, #tpu.memory_space<vmem>>, %arg6: memref<1x128xf32, #tpu.memory_space<vmem>>, %arg7: memref<128x8xf32, #tpu.memory_space<vmem>>, %arg8: memref<8x128xf32, #tpu.memory_space<vmem>>, %arg9: memref<32x128xf32, #tpu.memory_space<vmem>>, %arg10: memref<2x18x128xf32, #tpu.memory_space<vmem>>) attributes {dimension_semantics = [], scalar_prefetch = 0 : i64, scratch_operands = 1 : i64, tpu.core_type = #tpu.core_type<tc>} {
    %cst = arith.constant 0.000000e+00 : f32
    %0 = vector.broadcast %cst : f32 to vector<32x128xf32>
    %c0 = arith.constant 0 : index
    %c0_0 = arith.constant 0 : index
    %c0_1 = arith.constant 0 : index
    %1 = vector.load %arg0[%c0, %c0_0, %c0_1] : memref<2x18x128xf32, #tpu.memory_space<vmem>>, vector<2x16x128xf32>
    %2 = vector.shape_cast %1 : vector<2x16x128xf32> to vector<32x128xf32>
    %c0_2 = arith.constant 0 : index
    %c0_3 = arith.constant 0 : index
    %c0_4 = arith.constant 0 : index
    %3 = vector.load %arg1[%c0_2, %c0_3, %c0_4] : memref<3x128x128xf32, #tpu.memory_space<vmem>>, vector<1x128x128xf32>
    %4 = vector.shape_cast %3 : vector<1x128x128xf32> to vector<128x128xf32>
    %cst_5 = arith.constant dense<0.000000e+00> : vector<32x128xf32>
    %5 = tpu.matmul %2, %4, %cst_5 {dimension_numbers = #tpu.dot_dimension_numbers<[1], [0], [0], [1], [0, 0, 1, 1], [], []>} : vector<32x128xf32>, vector<128x128xf32>, vector<32x128xf32> -> vector<32x128xf32>
    %6 = arith.addf %0, %5 : vector<32x128xf32>
    %c0_6 = arith.constant 0 : index
    %c1 = arith.constant 1 : index
    %c0_7 = arith.constant 0 : index
    %7 = vector.load %arg0[%c0_6, %c1, %c0_7] : memref<2x18x128xf32, #tpu.memory_space<vmem>>, vector<2x16x128xf32>
    %8 = vector.shape_cast %7 : vector<2x16x128xf32> to vector<32x128xf32>
    %c1_8 = arith.constant 1 : index
    %c0_9 = arith.constant 0 : index
    %c0_10 = arith.constant 0 : index
    %9 = vector.load %arg1[%c1_8, %c0_9, %c0_10] : memref<3x128x128xf32, #tpu.memory_space<vmem>>, vector<1x128x128xf32>
    %10 = vector.shape_cast %9 : vector<1x128x128xf32> to vector<128x128xf32>
    %cst_11 = arith.constant dense<0.000000e+00> : vector<32x128xf32>
    %11 = tpu.matmul %8, %10, %cst_11 {dimension_numbers = #tpu.dot_dimension_numbers<[1], [0], [0], [1], [0, 0, 1, 1], [], []>} : vector<32x128xf32>, vector<128x128xf32>, vector<32x128xf32> -> vector<32x128xf32>
    %12 = arith.addf %6, %11 : vector<32x128xf32>
    %c0_12 = arith.constant 0 : index
    %c2 = arith.constant 2 : index
    %c0_13 = arith.constant 0 : index
    %13 = vector.load %arg0[%c0_12, %c2, %c0_13] : memref<2x18x128xf32, #tpu.memory_space<vmem>>, vector<2x16x128xf32>
    %14 = vector.shape_cast %13 : vector<2x16x128xf32> to vector<32x128xf32>
    %c2_14 = arith.constant 2 : index
    %c0_15 = arith.constant 0 : index
    %c0_16 = arith.constant 0 : index
    %15 = vector.load %arg1[%c2_14, %c0_15, %c0_16] : memref<3x128x128xf32, #tpu.memory_space<vmem>>, vector<1x128x128xf32>
    %16 = vector.shape_cast %15 : vector<1x128x128xf32> to vector<128x128xf32>
    %cst_17 = arith.constant dense<0.000000e+00> : vector<32x128xf32>
    %17 = tpu.matmul %14, %16, %cst_17 {dimension_numbers = #tpu.dot_dimension_numbers<[1], [0], [0], [1], [0, 0, 1, 1], [], []>} : vector<32x128xf32>, vector<128x128xf32>, vector<32x128xf32> -> vector<32x128xf32>
    %18 = arith.addf %12, %17 : vector<32x128xf32>
    %cst_18 = arith.constant dense<0.000000e+00> : vector<128xf32>
    %19 = vector.multi_reduction <add>, %18, %cst_18 [0] : vector<32x128xf32> to vector<128xf32>
    %20 = vector.shape_cast %19 : vector<128xf32> to vector<1x128xf32>
    %21 = arith.mulf %18, %18 : vector<32x128xf32>
    %cst_19 = arith.constant dense<0.000000e+00> : vector<128xf32>
    %22 = vector.multi_reduction <add>, %21, %cst_19 [0] : vector<32x128xf32> to vector<128xf32>
    %23 = vector.shape_cast %22 : vector<128xf32> to vector<1x128xf32>
    %c0_20 = arith.constant 0 : index
    %c0_21 = arith.constant 0 : index
    %24 = vector.load %arg7[%c0_20, %c0_21] : memref<128x8xf32, #tpu.memory_space<vmem>>, vector<128x8xf32>
    %cst_22 = arith.constant dense<0.000000e+00> : vector<1x8xf32>
    %25 = tpu.matmul %20, %24, %cst_22 {dimension_numbers = #tpu.dot_dimension_numbers<[1], [0], [0], [1], [0, 0, 1, 1], [], []>} : vector<1x128xf32>, vector<128x8xf32>, vector<1x8xf32> -> vector<1x8xf32>
    %c0_23 = arith.constant 0 : index
    %c0_24 = arith.constant 0 : index
    %26 = vector.load %arg7[%c0_23, %c0_24] : memref<128x8xf32, #tpu.memory_space<vmem>>, vector<128x8xf32>
    %cst_25 = arith.constant dense<0.000000e+00> : vector<1x8xf32>
    %27 = tpu.matmul %23, %26, %cst_25 {dimension_numbers = #tpu.dot_dimension_numbers<[1], [0], [0], [1], [0, 0, 1, 1], [], []>} : vector<1x128xf32>, vector<128x8xf32>, vector<1x8xf32> -> vector<1x8xf32>
    %cst_26 = arith.constant 5.120000e+02 : f32
    %28 = vector.broadcast %cst_26 : f32 to vector<1x8xf32>
    %29 = arith.divf %25, %28 : vector<1x8xf32>
    %cst_27 = arith.constant 5.120000e+02 : f32
    %30 = vector.broadcast %cst_27 : f32 to vector<1x8xf32>
    %31 = arith.divf %27, %30 : vector<1x8xf32>
    %32 = arith.mulf %29, %29 : vector<1x8xf32>
    %33 = arith.subf %31, %32 : vector<1x8xf32>
    %cst_28 = arith.constant 9.99999974E-6 : f32
    %34 = vector.broadcast %cst_28 : f32 to vector<1x8xf32>
    %35 = arith.addf %33, %34 : vector<1x8xf32>
    %36 = math.rsqrt %35 : vector<1x8xf32>
    %c0_29 = arith.constant 0 : index
    %c0_30 = arith.constant 0 : index
    %37 = vector.load %arg8[%c0_29, %c0_30] : memref<8x128xf32, #tpu.memory_space<vmem>>, vector<8x128xf32>
    %cst_31 = arith.constant dense<0.000000e+00> : vector<1x128xf32>
    %38 = tpu.matmul %29, %37, %cst_31 {dimension_numbers = #tpu.dot_dimension_numbers<[1], [0], [0], [1], [0, 0, 1, 1], [], []>} : vector<1x8xf32>, vector<8x128xf32>, vector<1x128xf32> -> vector<1x128xf32>
    %c0_32 = arith.constant 0 : index
    %c0_33 = arith.constant 0 : index
    %39 = vector.load %arg8[%c0_32, %c0_33] : memref<8x128xf32, #tpu.memory_space<vmem>>, vector<8x128xf32>
    %cst_34 = arith.constant dense<0.000000e+00> : vector<1x128xf32>
    %40 = tpu.matmul %36, %39, %cst_34 {dimension_numbers = #tpu.dot_dimension_numbers<[1], [0], [0], [1], [0, 0, 1, 1], [], []>} : vector<1x8xf32>, vector<8x128xf32>, vector<1x128xf32> -> vector<1x128xf32>
    %41 = vector.broadcast %38 : vector<1x128xf32> to vector<32x128xf32>
    %42 = arith.subf %18, %41 : vector<32x128xf32>
    %43 = vector.broadcast %40 : vector<1x128xf32> to vector<32x128xf32>
    %44 = arith.mulf %42, %43 : vector<32x128xf32>
    %c0_35 = arith.constant 0 : index
    %c0_36 = arith.constant 0 : index
    %45 = vector.load %arg2[%c0_35, %c0_36] : memref<1x128xf32, #tpu.memory_space<vmem>>, vector<1x128xf32>
    %46 = vector.broadcast %45 : vector<1x128xf32> to vector<32x128xf32>
    %47 = arith.mulf %44, %46 : vector<32x128xf32>
    %c0_37 = arith.constant 0 : index
    %c0_38 = arith.constant 0 : index
    %48 = vector.load %arg3[%c0_37, %c0_38] : memref<1x128xf32, #tpu.memory_space<vmem>>, vector<1x128xf32>
    %49 = vector.broadcast %48 : vector<1x128xf32> to vector<32x128xf32>
    %50 = arith.addf %47, %49 : vector<32x128xf32>
    %cst_39 = arith.constant 0.000000e+00 : f32
    %51 = vector.broadcast %cst_39 : f32 to vector<32x128xf32>
    %52 = arith.maximumf %50, %51 : vector<32x128xf32>
    %cst_40 = arith.constant 0.000000e+00 : f32
    %53 = vector.broadcast %cst_40 : f32 to vector<2x1x128xf32>
    %c0_41 = arith.constant 0 : index
    %c0_42 = arith.constant 0 : index
    %c0_43 = arith.constant 0 : index
    %54 = vector.load %arg10[%c0_41, %c0_42, %c0_43] : memref<2x18x128xf32, #tpu.memory_space<vmem>>, vector<2x1x128xf32>
    tpu.vector_store %arg10[%c0_41, %c0_42, %c0_43], %53 {strides = array<i32>} : memref<2x18x128xf32, #tpu.memory_space<vmem>>, vector<2x1x128xf32>,
    %cst_44 = arith.constant 0.000000e+00 : f32
    %55 = vector.broadcast %cst_44 : f32 to vector<2x1x128xf32>
    %c0_45 = arith.constant 0 : index
    %c17 = arith.constant 17 : index
    %c0_46 = arith.constant 0 : index
    %56 = vector.load %arg10[%c0_45, %c17, %c0_46] : memref<2x18x128xf32, #tpu.memory_space<vmem>>, vector<2x1x128xf32>
    tpu.vector_store %arg10[%c0_45, %c17, %c0_46], %55 {strides = array<i32>} : memref<2x18x128xf32, #tpu.memory_space<vmem>>, vector<2x1x128xf32>,
    %57 = vector.shape_cast %52 : vector<32x128xf32> to vector<2x16x128xf32>
    %c0_47 = arith.constant 0 : index
    %c1_48 = arith.constant 1 : index
    %c0_49 = arith.constant 0 : index
    %58 = vector.load %arg10[%c0_47, %c1_48, %c0_49] : memref<2x18x128xf32, #tpu.memory_space<vmem>>, vector<2x16x128xf32>
    tpu.vector_store %arg10[%c0_47, %c1_48, %c0_49], %57 {strides = array<i32>} : memref<2x18x128xf32, #tpu.memory_space<vmem>>, vector<2x16x128xf32>,
    %cst_50 = arith.constant 0.000000e+00 : f32
    %59 = vector.broadcast %cst_50 : f32 to vector<32x128xf32>
    %c0_51 = arith.constant 0 : index
    %c0_52 = arith.constant 0 : index
    %c0_53 = arith.constant 0 : index
    %60 = vector.load %arg10[%c0_51, %c0_52, %c0_53] : memref<2x18x128xf32, #tpu.memory_space<vmem>>, vector<2x16x128xf32>
    %61 = vector.shape_cast %60 : vector<2x16x128xf32> to vector<32x128xf32>
    %c0_54 = arith.constant 0 : index
    %c0_55 = arith.constant 0 : index
    %c0_56 = arith.constant 0 : index
    %62 = vector.load %arg4[%c0_54, %c0_55, %c0_56] : memref<3x128x128xf32, #tpu.memory_space<vmem>>, vector<1x128x128xf32>
    %63 = vector.shape_cast %62 : vector<1x128x128xf32> to vector<128x128xf32>
    %cst_57 = arith.constant dense<0.000000e+00> : vector<32x128xf32>
    %64 = tpu.matmul %61, %63, %cst_57 {dimension_numbers = #tpu.dot_dimension_numbers<[1], [0], [0], [1], [0, 0, 1, 1], [], []>} : vector<32x128xf32>, vector<128x128xf32>, vector<32x128xf32> -> vector<32x128xf32>
    %65 = arith.addf %59, %64 : vector<32x128xf32>
    %c0_58 = arith.constant 0 : index
    %c1_59 = arith.constant 1 : index
    %c0_60 = arith.constant 0 : index
    %66 = vector.load %arg10[%c0_58, %c1_59, %c0_60] : memref<2x18x128xf32, #tpu.memory_space<vmem>>, vector<2x16x128xf32>
    %67 = vector.shape_cast %66 : vector<2x16x128xf32> to vector<32x128xf32>
    %c1_61 = arith.constant 1 : index
    %c0_62 = arith.constant 0 : index
    %c0_63 = arith.constant 0 : index
    %68 = vector.load %arg4[%c1_61, %c0_62, %c0_63] : memref<3x128x128xf32, #tpu.memory_space<vmem>>, vector<1x128x128xf32>
    %69 = vector.shape_cast %68 : vector<1x128x128xf32> to vector<128x128xf32>
    %cst_64 = arith.constant dense<0.000000e+00> : vector<32x128xf32>
    %70 = tpu.matmul %67, %69, %cst_64 {dimension_numbers = #tpu.dot_dimension_numbers<[1], [0], [0], [1], [0, 0, 1, 1], [], []>} : vector<32x128xf32>, vector<128x128xf32>, vector<32x128xf32> -> vector<32x128xf32>
    %71 = arith.addf %65, %70 : vector<32x128xf32>
    %c0_65 = arith.constant 0 : index
    %c2_66 = arith.constant 2 : index
    %c0_67 = arith.constant 0 : index
    %72 = vector.load %arg10[%c0_65, %c2_66, %c0_67] : memref<2x18x128xf32, #tpu.memory_space<vmem>>, vector<2x16x128xf32>
    %73 = vector.shape_cast %72 : vector<2x16x128xf32> to vector<32x128xf32>
    %c2_68 = arith.constant 2 : index
    %c0_69 = arith.constant 0 : index
    %c0_70 = arith.constant 0 : index
    %74 = vector.load %arg4[%c2_68, %c0_69, %c0_70] : memref<3x128x128xf32, #tpu.memory_space<vmem>>, vector<1x128x128xf32>
    %75 = vector.shape_cast %74 : vector<1x128x128xf32> to vector<128x128xf32>
    %cst_71 = arith.constant dense<0.000000e+00> : vector<32x128xf32>
    %76 = tpu.matmul %73, %75, %cst_71 {dimension_numbers = #tpu.dot_dimension_numbers<[1], [0], [0], [1], [0, 0, 1, 1], [], []>} : vector<32x128xf32>, vector<128x128xf32>, vector<32x128xf32> -> vector<32x128xf32>
    %77 = arith.addf %71, %76 : vector<32x128xf32>
    %cst_72 = arith.constant dense<0.000000e+00> : vector<128xf32>
    %78 = vector.multi_reduction <add>, %77, %cst_72 [0] : vector<32x128xf32> to vector<128xf32>
    %79 = vector.shape_cast %78 : vector<128xf32> to vector<1x128xf32>
    %80 = arith.mulf %77, %77 : vector<32x128xf32>
    %cst_73 = arith.constant dense<0.000000e+00> : vector<128xf32>
    %81 = vector.multi_reduction <add>, %80, %cst_73 [0] : vector<32x128xf32> to vector<128xf32>
    %82 = vector.shape_cast %81 : vector<128xf32> to vector<1x128xf32>
    %c0_74 = arith.constant 0 : index
    %c0_75 = arith.constant 0 : index
    %83 = vector.load %arg7[%c0_74, %c0_75] : memref<128x8xf32, #tpu.memory_space<vmem>>, vector<128x8xf32>
    %cst_76 = arith.constant dense<0.000000e+00> : vector<1x8xf32>
    %84 = tpu.matmul %79, %83, %cst_76 {dimension_numbers = #tpu.dot_dimension_numbers<[1], [0], [0], [1], [0, 0, 1, 1], [], []>} : vector<1x128xf32>, vector<128x8xf32>, vector<1x8xf32> -> vector<1x8xf32>
    %c0_77 = arith.constant 0 : index
    %c0_78 = arith.constant 0 : index
    %85 = vector.load %arg7[%c0_77, %c0_78] : memref<128x8xf32, #tpu.memory_space<vmem>>, vector<128x8xf32>
    %cst_79 = arith.constant dense<0.000000e+00> : vector<1x8xf32>
    %86 = tpu.matmul %82, %85, %cst_79 {dimension_numbers = #tpu.dot_dimension_numbers<[1], [0], [0], [1], [0, 0, 1, 1], [], []>} : vector<1x128xf32>, vector<128x8xf32>, vector<1x8xf32> -> vector<1x8xf32>
    %cst_80 = arith.constant 5.120000e+02 : f32
    %87 = vector.broadcast %cst_80 : f32 to vector<1x8xf32>
    %88 = arith.divf %84, %87 : vector<1x8xf32>
    %cst_81 = arith.constant 5.120000e+02 : f32
    %89 = vector.broadcast %cst_81 : f32 to vector<1x8xf32>
    %90 = arith.divf %86, %89 : vector<1x8xf32>
    %91 = arith.mulf %88, %88 : vector<1x8xf32>
    %92 = arith.subf %90, %91 : vector<1x8xf32>
    %cst_82 = arith.constant 9.99999974E-6 : f32
    %93 = vector.broadcast %cst_82 : f32 to vector<1x8xf32>
    %94 = arith.addf %92, %93 : vector<1x8xf32>
    %95 = math.rsqrt %94 : vector<1x8xf32>
    %c0_83 = arith.constant 0 : index
    %c0_84 = arith.constant 0 : index
    %96 = vector.load %arg8[%c0_83, %c0_84] : memref<8x128xf32, #tpu.memory_space<vmem>>, vector<8x128xf32>
    %cst_85 = arith.constant dense<0.000000e+00> : vector<1x128xf32>
    %97 = tpu.matmul %88, %96, %cst_85 {dimension_numbers = #tpu.dot_dimension_numbers<[1], [0], [0], [1], [0, 0, 1, 1], [], []>} : vector<1x8xf32>, vector<8x128xf32>, vector<1x128xf32> -> vector<1x128xf32>
    %c0_86 = arith.constant 0 : index
    %c0_87 = arith.constant 0 : index
    %98 = vector.load %arg8[%c0_86, %c0_87] : memref<8x128xf32, #tpu.memory_space<vmem>>, vector<8x128xf32>
    %cst_88 = arith.constant dense<0.000000e+00> : vector<1x128xf32>
    %99 = tpu.matmul %95, %98, %cst_88 {dimension_numbers = #tpu.dot_dimension_numbers<[1], [0], [0], [1], [0, 0, 1, 1], [], []>} : vector<1x8xf32>, vector<8x128xf32>, vector<1x128xf32> -> vector<1x128xf32>
    %100 = vector.broadcast %97 : vector<1x128xf32> to vector<32x128xf32>
    %101 = arith.subf %77, %100 : vector<32x128xf32>
    %102 = vector.broadcast %99 : vector<1x128xf32> to vector<32x128xf32>
    %103 = arith.mulf %101, %102 : vector<32x128xf32>
    %c0_89 = arith.constant 0 : index
    %c0_90 = arith.constant 0 : index
    %104 = vector.load %arg5[%c0_89, %c0_90] : memref<1x128xf32, #tpu.memory_space<vmem>>, vector<1x128xf32>
    %105 = vector.broadcast %104 : vector<1x128xf32> to vector<32x128xf32>
    %106 = arith.mulf %103, %105 : vector<32x128xf32>
    %c0_91 = arith.constant 0 : index
    %c0_92 = arith.constant 0 : index
    %107 = vector.load %arg6[%c0_91, %c0_92] : memref<1x128xf32, #tpu.memory_space<vmem>>, vector<1x128xf32>
    %108 = vector.broadcast %107 : vector<1x128xf32> to vector<32x128xf32>
    %109 = arith.addf %106, %108 : vector<32x128xf32>
    %c0_93 = arith.constant 0 : index
    %c1_94 = arith.constant 1 : index
    %c0_95 = arith.constant 0 : index
    %110 = vector.load %arg0[%c0_93, %c1_94, %c0_95] : memref<2x18x128xf32, #tpu.memory_space<vmem>>, vector<2x16x128xf32>
    %111 = vector.shape_cast %110 : vector<2x16x128xf32> to vector<32x128xf32>
    %112 = arith.addf %109, %111 : vector<32x128xf32>
    %cst_96 = arith.constant 0.000000e+00 : f32
    %113 = vector.broadcast %cst_96 : f32 to vector<32x128xf32>
    %114 = arith.maximumf %112, %113 : vector<32x128xf32>
    %c0_97 = arith.constant 0 : index
    %c0_98 = arith.constant 0 : index
    %115 = vector.load %arg9[%c0_97, %c0_98] : memref<32x128xf32, #tpu.memory_space<vmem>>, vector<32x128xf32>
    tpu.vector_store %arg9[%c0_97, %c0_98], %114 {strides = array<i32>} : memref<32x128xf32, #tpu.memory_space<vmem>>, vector<32x128xf32>,
    return
  }
}

</mosaic_0001>

<llo_original>
// kernel: tpu_custom_call.1
$region0: #{tpu_custom_call.1}
  #allocation0 [shape = 'u32[]', space=smem, size = 0x4, offset = 0x4, fixed_abs, tag = 'smem constant byte address 0x4 - core index']
  #allocation1 [shape = 'u32[144,128]{1,0:T(1,128)}', space=vmem, size = 0x12000, scoped, tag = 'internal scratch']
  #allocation2 [shape = 'f32[2,18,128]{2,1,0:T(8,128)}', space=vmem, size = 0x6000, scoped, tag = 'scratch operand']
  %s0 = inlined_call_operand.vmem [shape: f32[2,18,128], index: 0, kind: input, shape index: {}]
  %s1 = inlined_call_operand.hbm [shape: f32[3,128,128], index: 1, kind: input, shape index: {}]
  %s2 = inlined_call_operand.vmem [shape: f32[1,128], index: 2, kind: input, shape index: {}]
  %s3 = inlined_call_operand.vmem [shape: f32[1,128], index: 3, kind: input, shape index: {}]
  %s4 = inlined_call_operand.hbm [shape: f32[3,128,128], index: 4, kind: input, shape index: {}]
  %s5 = inlined_call_operand.vmem [shape: f32[1,128], index: 5, kind: input, shape index: {}]
  %s6 = inlined_call_operand.vmem [shape: f32[1,128], index: 6, kind: input, shape index: {}]
  %s7 = inlined_call_operand.vmem [shape: f32[128,8], index: 7, kind: input, shape index: {}]
  %s8 = inlined_call_operand.vmem [shape: f32[8,128], index: 8, kind: input, shape index: {}]
  %s9 = inlined_call_operand.hbm [shape: f32[32,128], index: 9, kind: output, shape index: {}]
  %s10 = sld [smem:[#allocation0]]
  $region54: #{tpu_custom_call.1} parent=0
    _
  %s12 = ssub.s32 1, %s10
  %s13 = scalar_select 0, %s12, %s10
  $region1: #{tpu_custom_call.1} parent=0
    #allocation3 [shape = 'u8[196608]{0}', space=vmem, size = 0x30000, scoped, tag = 'input window, operand 1, single buffered']
    #allocation4 [shape = 's32[1]{0}', space=sflag, size = 0x4, scoped, tag = 'scoped memory for tpu_custom_call.1']
    #allocation5 [shape = 's32[1]{0}', space=sflag, size = 0x4, scoped, tag = 'scoped memory for tpu_custom_call.1']
    #allocation6 [shape = 'u8[196608]{0}', space=vmem, size = 0x30000, scoped, tag = 'input window, operand 4, single buffered']
    #allocation7 [shape = 's32[1]{0}', space=sflag, size = 0x4, scoped, tag = 'scoped memory for tpu_custom_call.1']
    #allocation8 [shape = 'u8[16384]{0}', space=vmem, size = 0x4000, scoped, tag = 'output window, operand 0, single buffered']
    %14 = vsyncpa [#allocation4], 0
    %15 = vsyncpa [#allocation7], 0
    %16 = vsyncpa [#allocation5], 0
    // Predicated region
    $region2: #{tpu_custom_call.1} parent=1 // pred_check
      _
    $region3: #{tpu_custom_call.1} parent=1 // pred_check_branch
      %18 = sbr.rel (0) target = $region5
    $region4: #{tpu_custom_call.1} parent=1 // pred_region
      _
    $region5: #{tpu_custom_call.1} parent=1 // pred_fallthru
      _
    // Predicated region
    $region6: #{tpu_custom_call.1} parent=1 // pred_check
      _
    $region7: #{tpu_custom_call.1} parent=1 // pred_check_branch
      %20 = sbr.rel (0) target = $region9
    $region8: #{tpu_custom_call.1} parent=1 // pred_region
      %s22 = ssub.s32 6144, 6144
      %23 = vsyncadd [#allocation4], %s22
      %s24 = sshll.u32 [#allocation3], 4
      %s25 = int_to_ptr.vmem [resolvable:$true] %s24
      %30 = dma.hbm_to_vmem [thread:$0]  %s1, 6144, %s25, [#allocation4], 128, 128, 8
    $region9: #{tpu_custom_call.1} parent=1 // pred_fallthru
      _
    // Predicated region
    $region10: #{tpu_custom_call.1} parent=1 // pred_check
      _
    $region11: #{tpu_custom_call.1} parent=1 // pred_check_branch
      %32 = sbr.rel (0) target = $region13
    $region12: #{tpu_custom_call.1} parent=1 // pred_region
      _
    $region13: #{tpu_custom_call.1} parent=1 // pred_fallthru
      _
    // Predicated region
    $region14: #{tpu_custom_call.1} parent=1 // pred_check
      _
    $region15: #{tpu_custom_call.1} parent=1 // pred_check_branch
      %34 = sbr.rel (0) target = $region17
    $region16: #{tpu_custom_call.1} parent=1 // pred_region
      _
    $region17: #{tpu_custom_call.1} parent=1 // pred_fallthru
      _
    // Predicated region
    $region18: #{tpu_custom_call.1} parent=1 // pred_check
      _
    $region19: #{tpu_custom_call.1} parent=1 // pred_check_branch
      %36 = sbr.rel (0) target = $region21
    $region20: #{tpu_custom_call.1} parent=1 // pred_region
      %s38 = ssub.s32 6144, 6144
      %39 = vsyncadd [#allocation7], %s38
      %s40 = sshll.u32 [#allocation6], 4
      %s41 = int_to_ptr.vmem [resolvable:$true] %s40
      %46 = dma.hbm_to_vmem [thread:$0]  %s4, 6144, %s41, [#allocation7], 128, 128, 8
    $region21: #{tpu_custom_call.1} parent=1 // pred_fallthru
      _
    // Predicated region
    $region22: #{tpu_custom_call.1} parent=1 // pred_check
      _
    $region23: #{tpu_custom_call.1} parent=1 // pred_check_branch
      %48 = sbr.rel (0) target = $region25
    $region24: #{tpu_custom_call.1} parent=1 // pred_region
      _
    $region25: #{tpu_custom_call.1} parent=1 // pred_fallthru
      _
    // Predicated region
    $region26: #{tpu_custom_call.1} parent=1 // pred_check
      _
    $region27: #{tpu_custom_call.1} parent=1 // pred_check_branch
      %50 = sbr.rel (0) target = $region29
    $region28: #{tpu_custom_call.1} parent=1 // pred_region
      _
    $region29: #{tpu_custom_call.1} parent=1 // pred_fallthru
      _
    // Predicated region
    $region30: #{tpu_custom_call.1} parent=1 // pred_check
      _
    $region31: #{tpu_custom_call.1} parent=1 // pred_check_branch
      %52 = sbr.rel (0) target = $region33
    $region32: #{tpu_custom_call.1} parent=1 // pred_region
      _
    $region33: #{tpu_custom_call.1} parent=1 // pred_fallthru
      _
    // Predicated region
    $region34: #{tpu_custom_call.1} parent=1 // pred_check
      _
    $region35: #{tpu_custom_call.1} parent=1 // pred_check_branch
      %54 = sbr.rel (0) target = $region37
    $region36: #{tpu_custom_call.1} parent=1 // pred_region
      _
    $region37: #{tpu_custom_call.1} parent=1 // pred_fallthru
      _
    // Predicated region
    $region38: #{tpu_custom_call.1} parent=1 // pred_check
      _
    $region39: #{tpu_custom_call.1} parent=1 // pred_check_branch
      %56 = sbr.rel (0) target = $region41
    $region40: #{tpu_custom_call.1} parent=1 // pred_region
      %57 = dma.done [#allocation4], 6144
    $region41: #{tpu_custom_call.1} parent=1 // pred_fallthru
      _
    // Predicated region
    $region42: #{tpu_custom_call.1} parent=1 // pred_check
      _
    $region43: #{tpu_custom_call.1} parent=1 // pred_check_branch
      %59 = sbr.rel (0) target = $region45
    $region44: #{tpu_custom_call.1} parent=1 // pred_region
      %60 = dma.done [#allocation7], 6144
    $region45: #{tpu_custom_call.1} parent=1 // pred_fallthru
      _
    %v61 = vld [vmem:[%s0] sm:$0xff]
    %v62 = vld [vmem:[%s0 + $0x8] sm:$0xff]
    %v63 = vld [vmem:[%s0 + $0x18] sm:$0xff]
    %v64 = vld [vmem:[%s0 + $0x20] sm:$0xff]
    %v65 = vld [vmem:[#allocation3] sm:$0xff]
    %v66 = vld [vmem:[#allocation3 + $0x8] sm:$0xff]
    %v67 = vld [vmem:[#allocation3 + $0x10] sm:$0xff]
    %v68 = vld [vmem:[#allocation3 + $0x18] sm:$0xff]
    %v69 = vld [vmem:[#allocation3 + $0x20] sm:$0xff]
    %v70 = vld [vmem:[#allocation3 + $0x28] sm:$0xff]
    %v71 = vld [vmem:[#allocation3 + $0x30] sm:$0xff]
    %v72 = vld [vmem:[#allocation3 + $0x38] sm:$0xff]
    %v73 = vld [vmem:[#allocation3 + $0x40] sm:$0xff]
    %v74 = vld [vmem:[#allocation3 + $0x48] sm:$0xff]
    %v75 = vld [vmem:[#allocation3 + $0x50] sm:$0xff]
    %v76 = vld [vmem:[#allocation3 + $0x58] sm:$0xff]
    %v77 = vld [vmem:[#allocation3 + $0x60] sm:$0xff]
    %v78 = vld [vmem:[#allocation3 + $0x68] sm:$0xff]
    %v79 = vld [vmem:[#allocation3 + $0x70] sm:$0xff]
    %v80 = vld [vmem:[#allocation3 + $0x78] sm:$0xff]
    %v81 = vld [vmem:[%s0 + $0x1] sm:$0xff]
    %v82 = vld [vmem:[%s0 + $0x9] sm:$0xff]
    %v83 = vld [vmem:[%s0 + $0x19] sm:$0xff]
    %v84 = vld [vmem:[%s0 + $0x21] sm:$0xff]
    %s85 = scalar_lea.vmem [#allocation3], 128
    %v86 = vld [vmem:[%s85] sm:$0xff]
    %v87 = vld [vmem:[%s85 + $0x8] sm:$0xff]
    %v88 = vld [vmem:[%s85 + $0x10] sm:$0xff]
    %v89 = vld [vmem:[%s85 + $0x18] sm:$0xff]
    %v90 = vld [vmem:[%s85 + $0x20] sm:$0xff]
    %v91 = vld [vmem:[%s85 + $0x28] sm:$0xff]
    %v92 = vld [vmem:[%s85 + $0x30] sm:$0xff]
    %v93 = vld [vmem:[%s85 + $0x38] sm:$0xff]
    %v94 = vld [vmem:[%s85 + $0x40] sm:$0xff]
    %v95 = vld [vmem:[%s85 + $0x48] sm:$0xff]
    %v96 = vld [vmem:[%s85 + $0x50] sm:$0xff]
    %v97 = vld [vmem:[%s85 + $0x58] sm:$0xff]
    %v98 = vld [vmem:[%s85 + $0x60] sm:$0xff]
    %v99 = vld [vmem:[%s85 + $0x68] sm:$0xff]
    %v100 = vld [vmem:[%s85 + $0x70] sm:$0xff]
    %v101 = vld [vmem:[%s85 + $0x78] sm:$0xff]
    %102 = vmatprep.subr.mxu0 0.0
    %103 = vmatpush1.msra.mxu0 %v101
    %104 = vmatprep.subr.mxu0 0.0
    %105 = vmatpush1.msra.mxu0 %v100
    %106 = vmatprep.subr.mxu0 0.0
    %107 = vmatpush1.msra.mxu0 %v99
    %108 = vmatprep.subr.mxu0 0.0
    %109 = vmatpush1.msra.mxu0 %v98
    %110 = vmatprep.subr.mxu0 0.0
    %111 = vmatpush1.msra.mxu0 %v97
    %112 = vmatprep.subr.mxu0 0.0
    %113 = vmatpush1.msra.mxu0 %v96
    %114 = vmatprep.subr.mxu0 0.0
    %115 = vmatpush1.msra.mxu0 %v95
    %116 = vmatprep.subr.mxu0 0.0
    %117 = vmatpush1.msra.mxu0 %v94
    %118 = vmatprep.subr.mxu0 0.0
    %119 = vmatpush1.msra.mxu0 %v93
    %120 = vmatprep.subr.mxu0 0.0
    %121 = vmatpush1.msra.mxu0 %v92
    %122 = vmatprep.subr.mxu0 0.0
    %123 = vmatpush1.msra.mxu0 %v91
    %124 = vmatprep.subr.mxu0 0.0
    %125 = vmatpush1.msra.mxu0 %v90
    %126 = vmatprep.subr.mxu0 0.0
    %127 = vmatpush1.msra.mxu0 %v89
    %128 = vmatprep.subr.mxu0 0.0
    %129 = vmatpush1.msra.mxu0 %v88
    %130 = vmatprep.subr.mxu0 0.0
    %131 = vmatpush1.msra.mxu0 %v87
    %132 = vmatprep.subr.mxu0 0.0
    %133 = vmatpush1.msra.mxu0 %v86
    %134 = vmatprep.subr.mxu0 0.0
    %135 = vmatpush2.msra.mxu0 0.0
    %136 = vmatprep.subr.mxu0 0.0
    %137 = vmatpush2.msra.mxu0 0.0
    %138 = vmatprep.subr.mxu0 0.0
    %139 = vmatpush2.msra.mxu0 0.0
    %140 = vmatprep.subr.mxu0 0.0
    %141 = vmatpush2.msra.mxu0 0.0
    %142 = vmatprep.subr.mxu0 0.0
    %143 = vmatpush2.msra.mxu0 0.0
    %144 = vmatprep.subr.mxu0 0.0
    %145 = vmatpush2.msra.mxu0 0.0
    %146 = vmatprep.subr.mxu0 0.0
    %147 = vmatpush2.msra.mxu0 0.0
    %148 = vmatprep.subr.mxu0 0.0
    %149 = vmatpush2.msra.mxu0 0.0
    %150 = vmatprep.subr.mxu0 0.0
    %151 = vmatpush2.msra.mxu0 0.0
    %152 = vmatprep.subr.mxu0 0.0
    %153 = vmatpush2.msra.mxu0 0.0
    %154 = vmatprep.subr.mxu0 0.0
    %155 = vmatpush2.msra.mxu0 0.0
    %156 = vmatprep.subr.mxu0 0.0
    %157 = vmatpush2.msra.mxu0 0.0
    %158 = vmatprep.subr.mxu0 0.0
    %159 = vmatpush2.msra.mxu0 0.0
    %160 = vmatprep.subr.mxu0 0.0
    %161 = vmatpush2.msra.mxu0 0.0
    %162 = vmatprep.subr.mxu0 0.0
    %163 = vmatpush2.msra.mxu0 0.0
    %164 = vmatprep.subr.mxu0 0.0
    %165 = vmatpush2.msra.mxu0 0.0
    %166 = vmatprep.mubr.f32.mxu0 0.0
    %167 = vmatmul.mubr.f32.gmra.mxu0 %v81
    %v168 = vpop.f32.mrf.mxu0
    %v169 = vadd.f32 0.0, %v168
    %v170 = vpop.f32.mrf.mxu0
    %171 = vmatprep.mubr.f32.mxu0 0.0
    %172 = vmatmul.mubr.f32.gmra.mxu0 %v82
    %v173 = vpop.f32.mrf.mxu0
    %v174 = vadd.f32 0.0, %v173
    %v175 = vpop.f32.mrf.mxu0
    %176 = vmatprep.mubr.f32.mxu0 0.0
    %177 = vmatmul.mubr.f32.gmra.mxu0 %v83
    %v178 = vpop.f32.mrf.mxu0
    %v179 = vadd.f32 0.0, %v178
    %v180 = vpop.f32.mrf.mxu0
    %181 = vmatprep.mubr.f32.mxu0 0.0
    %182 = vmatmul.mubr.f32.gmra.mxu0 %v84
    %v183 = vpop.f32.mrf.mxu0
    %v184 = vadd.f32 0.0, %v183
    %v185 = vpop.f32.mrf.mxu0
    %186 = vdwg.mxu0
    %187 = vmatprep.subr.mxu0 0.0
    %188 = vmatpush1.msra.mxu0 %v80
    %189 = vmatprep.subr.mxu0 0.0
    %190 = vmatpush1.msra.mxu0 %v79
    %191 = vmatprep.subr.mxu0 0.0
    %192 = vmatpush1.msra.mxu0 %v78
    %193 = vmatprep.subr.mxu0 0.0
    %194 = vmatpush1.msra.mxu0 %v77
    %195 = vmatprep.subr.mxu0 0.0
    %196 = vmatpush1.msra.mxu0 %v76
    %197 = vmatprep.subr.mxu0 0.0
    %198 = vmatpush1.msra.mxu0 %v75
    %199 = vmatprep.subr.mxu0 0.0
    %200 = vmatpush1.msra.mxu0 %v74
    %201 = vmatprep.subr.mxu0 0.0
    %202 = vmatpush1.msra.mxu0 %v73
    %203 = vmatprep.subr.mxu0 0.0
    %204 = vmatpush1.msra.mxu0 %v72
    %205 = vmatprep.subr.mxu0 0.0
    %206 = vmatpush1.msra.mxu0 %v71
    %207 = vmatprep.subr.mxu0 0.0
    %208 = vmatpush1.msra.mxu0 %v70
    %209 = vmatprep.subr.mxu0 0.0
    %210 = vmatpush1.msra.mxu0 %v69
    %211 = vmatprep.subr.mxu0 0.0
    %212 = vmatpush1.msra.mxu0 %v68
    %213 = vmatprep.subr.mxu0 0.0
    %214 = vmatpush1.msra.mxu0 %v67
    %215 = vmatprep.subr.mxu0 0.0
    %216 = vmatpush1.msra.mxu0 %v66
    %217 = vmatprep.subr.mxu0 0.0
    %218 = vmatpush1.msra.mxu0 %v65
    %219 = vmatprep.subr.mxu0 0.0
    %220 = vmatpush2.msra.mxu0 0.0
    %221 = vmatprep.subr.mxu0 0.0
    %222 = vmatpush2.msra.mxu0 0.0
    %223 = vmatprep.subr.mxu0 0.0
    %224 = vmatpush2.msra.mxu0 0.0
    %225 = vmatprep.subr.mxu0 0.0
    %226 = vmatpush2.msra.mxu0 0.0
    %227 = vmatprep.subr.mxu0 0.0
    %228 = vmatpush2.msra.mxu0 0.0
    %229 = vmatprep.subr.mxu0 0.0
    %230 = vmatpush2.msra.mxu0 0.0
    %231 = vmatprep.subr.mxu0 0.0
    %232 = vmatpush2.msra.mxu0 0.0
    %233 = vmatprep.subr.mxu0 0.0
    %234 = vmatpush2.msra.mxu0 0.0
    %235 = vmatprep.subr.mxu0 0.0
    %236 = vmatpush2.msra.mxu0 0.0
    %237 = vmatprep.subr.mxu0 0.0
    %238 = vmatpush2.msra.mxu0 0.0
    %239 = vmatprep.subr.mxu0 0.0
    %240 = vmatpush2.msra.mxu0 0.0
    %241 = vmatprep.subr.mxu0 0.0
    %242 = vmatpush2.msra.mxu0 0.0
    %243 = vmatprep.subr.mxu0 0.0
    %244 = vmatpush2.msra.mxu0 0.0
    %245 = vmatprep.subr.mxu0 0.0
    %246 = vmatpush2.msra.mxu0 0.0
    %247 = vmatprep.subr.mxu0 0.0
    %248 = vmatpush2.msra.mxu0 0.0
    %249 = vmatprep.subr.mxu0 0.0
    %250 = vmatpush2.msra.mxu0 0.0
    %251 = vmatprep.mubr.f32.mxu0 0.0
    %252 = vmatmul.mubr.f32.gmra.mxu0 %v61
    %v253 = vpop.f32.mrf.mxu0
    %v254 = vadd.f32 %v169, %v253
    %v255 = vpop.f32.mrf.mxu0
    %256 = vmatprep.mubr.f32.mxu0 0.0
    %257 = vmatmul.mubr.f32.gmra.mxu0 %v62
    %v258 = vpop.f32.mrf.mxu0
    %v259 = vadd.f32 %v174, %v258
    %v260 = vpop.f32.mrf.mxu0
    %261 = vmatprep.mubr.f32.mxu0 0.0
    %262 = vmatmul.mubr.f32.gmra.mxu0 %v63
    %v263 = vpop.f32.mrf.mxu0
    %v264 = vadd.f32 %v179, %v263
    %v265 = vpop.f32.mrf.mxu0
    %266 = vmatprep.mubr.f32.mxu0 0.0
    %267 = vmatmul.mubr.f32.gmra.mxu0 %v64
    %v268 = vpop.f32.mrf.mxu0
    %v269 = vadd.f32 %v184, %v268
    %v270 = vpop.f32.mrf.mxu0
    %271 = vdwg.mxu0
    %v272 = vld [vmem:[%s0 + $0x2] sm:$0xff]
    %v273 = vld [vmem:[%s0 + $0xa] sm:$0xff]
    %v274 = vld [vmem:[%s0 + $0x1a] sm:$0xff]
    %v275 = vld [vmem:[%s0 + $0x22] sm:$0xff]
    %s276 = scalar_lea.vmem [#allocation3], 256
    %v277 = vld [vmem:[%s276] sm:$0xff]
    %v278 = vld [vmem:[%s276 + $0x8] sm:$0xff]
    %v279 = vld [vmem:[%s276 + $0x10] sm:$0xff]
    %v280 = vld [vmem:[%s276 + $0x18] sm:$0xff]
    %v281 = vld [vmem:[%s276 + $0x20] sm:$0xff]
    %v282 = vld [vmem:[%s276 + $0x28] sm:$0xff]
    %v283 = vld [vmem:[%s276 + $0x30] sm:$0xff]
    %v284 = vld [vmem:[%s276 + $0x38] sm:$0xff]
    %v285 = vld [vmem:[%s276 + $0x40] sm:$0xff]
    %v286 = vld [vmem:[%s276 + $0x48] sm:$0xff]
    %v287 = vld [vmem:[%s276 + $0x50] sm:$0xff]
    %v288 = vld [vmem:[%s276 + $0x58] sm:$0xff]
    %v289 = vld [vmem:[%s276 + $0x60] sm:$0xff]
    %v290 = vld [vmem:[%s276 + $0x68] sm:$0xff]
    %v291 = vld [vmem:[%s276 + $0x70] sm:$0xff]
    %v292 = vld [vmem:[%s276 + $0x78] sm:$0xff]
    %293 = vmatprep.subr.mxu0 0.0
    %294 = vmatpush1.msra.mxu0 %v292
    %295 = vmatprep.subr.mxu0 0.0
    %296 = vmatpush1.msra.mxu0 %v291
    %297 = vmatprep.subr.mxu0 0.0
    %298 = vmatpush1.msra.mxu0 %v290
    %299 = vmatprep.subr.mxu0 0.0
    %300 = vmatpush1.msra.mxu0 %v289
    %301 = vmatprep.subr.mxu0 0.0
    %302 = vmatpush1.msra.mxu0 %v288
    %303 = vmatprep.subr.mxu0 0.0
    %304 = vmatpush1.msra.mxu0 %v287
    %305 = vmatprep.subr.mxu0 0.0
    %306 = vmatpush1.msra.mxu0 %v286
    %307 = vmatprep.subr.mxu0 0.0
    %308 = vmatpush1.msra.mxu0 %v285
    %309 = vmatprep.subr.mxu0 0.0
    %310 = vmatpush1.msra.mxu0 %v284
    %311 = vmatprep.subr.mxu0 0.0
    %312 = vmatpush1.msra.mxu0 %v283
    %313 = vmatprep.subr.mxu0 0.0
    %314 = vmatpush1.msra.mxu0 %v282
    %315 = vmatprep.subr.mxu0 0.0
    %316 = vmatpush1.msra.mxu0 %v281
    %317 = vmatprep.subr.mxu0 0.0
    %318 = vmatpush1.msra.mxu0 %v280
    %319 = vmatprep.subr.mxu0 0.0
    %320 = vmatpush1.msra.mxu0 %v279
    %321 = vmatprep.subr.mxu0 0.0
    %322 = vmatpush1.msra.mxu0 %v278
    %323 = vmatprep.subr.mxu0 0.0
    %324 = vmatpush1.msra.mxu0 %v277
    %325 = vmatprep.subr.mxu0 0.0
    %326 = vmatpush2.msra.mxu0 0.0
    %327 = vmatprep.subr.mxu0 0.0
    %328 = vmatpush2.msra.mxu0 0.0
    %329 = vmatprep.subr.mxu0 0.0
    %330 = vmatpush2.msra.mxu0 0.0
    %331 = vmatprep.subr.mxu0 0.0
    %332 = vmatpush2.msra.mxu0 0.0
    %333 = vmatprep.subr.mxu0 0.0
    %334 = vmatpush2.msra.mxu0 0.0
    %335 = vmatprep.subr.mxu0 0.0
    %336 = vmatpush2.msra.mxu0 0.0
    %337 = vmatprep.subr.mxu0 0.0
    %338 = vmatpush2.msra.mxu0 0.0
    %339 = vmatprep.subr.mxu0 0.0
    %340 = vmatpush2.msra.mxu0 0.0
    %341 = vmatprep.subr.mxu0 0.0
    %342 = vmatpush2.msra.mxu0 0.0
    %343 = vmatprep.subr.mxu0 0.0
    %344 = vmatpush2.msra.mxu0 0.0
    %345 = vmatprep.subr.mxu0 0.0
    %346 = vmatpush2.msra.mxu0 0.0
    %347 = vmatprep.subr.mxu0 0.0
    %348 = vmatpush2.msra.mxu0 0.0
    %349 = vmatprep.subr.mxu0 0.0
    %350 = vmatpush2.msra.mxu0 0.0
    %351 = vmatprep.subr.mxu0 0.0
    %352 = vmatpush2.msra.mxu0 0.0
    %353 = vmatprep.subr.mxu0 0.0
    %354 = vmatpush2.msra.mxu0 0.0
    %355 = vmatprep.subr.mxu0 0.0
    %356 = vmatpush2.msra.mxu0 0.0
    %357 = vmatprep.mubr.f32.mxu0 0.0
    %358 = vmatmul.mubr.f32.gmra.mxu0 %v272
    %v359 = vpop.f32.mrf.mxu0
    %v360 = vadd.f32 0.0, %v359
    %v361 = vpop.f32.mrf.mxu0
    %362 = vmatprep.mubr.f32.mxu0 0.0
    %363 = vmatmul.mubr.f32.gmra.mxu0 %v273
    %v364 = vpop.f32.mrf.mxu0
    %v365 = vadd.f32 0.0, %v364
    %v366 = vpop.f32.mrf.mxu0
    %367 = vmatprep.mubr.f32.mxu0 0.0
    %368 = vmatmul.mubr.f32.gmra.mxu0 %v274
    %v369 = vpop.f32.mrf.mxu0
    %v370 = vadd.f32 0.0, %v369
    %v371 = vpop.f32.mrf.mxu0
    %372 = vmatprep.mubr.f32.mxu0 0.0
    %373 = vmatmul.mubr.f32.gmra.mxu0 %v275
    %v374 = vpop.f32.mrf.mxu0
    %v375 = vadd.f32 0.0, %v374
    %v376 = vpop.f32.mrf.mxu0
    %377 = vdwg.mxu0
    %v378 = vadd.f32 %v254, %v360
    %v379 = vadd.f32 %v259, %v365
    %v380 = vadd.f32 %v264, %v370
    %v381 = vadd.f32 %v269, %v375
    %v382 = vadd.f32 %v378, %v379
    %v383 = vadd.f32 %v382, %v380
    %v384 = vadd.f32 %v383, %v381
    %v385 = vrot.slane %v384, 4
    %v386 = vadd.f32 %v384, %v385
    %v387 = vrot.slane %v386, 2
    %v388 = vadd.f32 %v386, %v387
    %v389 = vrot.slane %v388, 1
    %v390 = vadd.f32 %v388, %v389
    %v391 = vmul.f32 %v378, %v378
    %v392 = vmul.f32 %v379, %v379
    %v393 = vmul.f32 %v380, %v380
    %v394 = vmul.f32 %v381, %v381
    %v395 = vadd.f32 %v391, %v392
    %v396 = vadd.f32 %v395, %v393
    %v397 = vadd.f32 %v396, %v394
    %v398 = vrot.slane %v397, 4
    %v399 = vadd.f32 %v397, %v398
    %v400 = vrot.slane %v399, 2
    %v401 = vadd.f32 %v399, %v400
    %v402 = vrot.slane %v401, 1
    %v403 = vadd.f32 %v401, %v402
    %v404 = vld [vmem:[%s7] sm:$0xff]
    %v405 = vld [vmem:[%s7 + $0x8] sm:$0xff]
    %v406 = vld [vmem:[%s7 + $0x10] sm:$0xff]
    %v407 = vld [vmem:[%s7 + $0x18] sm:$0xff]
    %v408 = vld [vmem:[%s7 + $0x20] sm:$0xff]
    %v409 = vld [vmem:[%s7 + $0x28] sm:$0xff]
    %v410 = vld [vmem:[%s7 + $0x30] sm:$0xff]
    %v411 = vld [vmem:[%s7 + $0x38] sm:$0xff]
    %v412 = vld [vmem:[%s7 + $0x40] sm:$0xff]
    %v413 = vld [vmem:[%s7 + $0x48] sm:$0xff]
    %v414 = vld [vmem:[%s7 + $0x50] sm:$0xff]
    %v415 = vld [vmem:[%s7 + $0x58] sm:$0xff]
    %v416 = vld [vmem:[%s7 + $0x60] sm:$0xff]
    %v417 = vld [vmem:[%s7 + $0x68] sm:$0xff]
    %v418 = vld [vmem:[%s7 + $0x70] sm:$0xff]
    %v419 = vld [vmem:[%s7 + $0x78] sm:$0xff]
    %420 = vmatprep.subr.mxu0 0.0
    %421 = vmatpush1.msra.mxu0 %v419
    %422 = vmatprep.subr.mxu0 0.0
    %423 = vmatpush1.msra.mxu0 %v418
    %424 = vmatprep.subr.mxu0 0.0
    %425 = vmatpush1.msra.mxu0 %v417
    %426 = vmatprep.subr.mxu0 0.0
    %427 = vmatpush1.msra.mxu0 %v416
    %428 = vmatprep.subr.mxu0 0.0
    %429 = vmatpush1.msra.mxu0 %v415
    %430 = vmatprep.subr.mxu0 0.0
    %431 = vmatpush1.msra.mxu0 %v414
    %432 = vmatprep.subr.mxu0 0.0
    %433 = vmatpush1.msra.mxu0 %v413
    %434 = vmatprep.subr.mxu0 0.0
    %435 = vmatpush1.msra.mxu0 %v412
    %436 = vmatprep.subr.mxu0 0.0
    %437 = vmatpush1.msra.mxu0 %v411
    %438 = vmatprep.subr.mxu0 0.0
    %439 = vmatpush1.msra.mxu0 %v410
    %440 = vmatprep.subr.mxu0 0.0
    %441 = vmatpush1.msra.mxu0 %v409
    %442 = vmatprep.subr.mxu0 0.0
    %443 = vmatpush1.msra.mxu0 %v408
    %444 = vmatprep.subr.mxu0 0.0
    %445 = vmatpush1.msra.mxu0 %v407
    %446 = vmatprep.subr.mxu0 0.0
    %447 = vmatpush1.msra.mxu0 %v406
    %448 = vmatprep.subr.mxu0 0.0
    %449 = vmatpush1.msra.mxu0 %v405
    %450 = vmatprep.subr.mxu0 0.0
    %451 = vmatpush1.msra.mxu0 %v404
    %452 = vmatprep.subr.mxu0 0.0
    %453 = vmatpush2.msra.mxu0 0.0
    %454 = vmatprep.subr.mxu0 0.0
    %455 = vmatpush2.msra.mxu0 0.0
    %456 = vmatprep.subr.mxu0 0.0
    %457 = vmatpush2.msra.mxu0 0.0
    %458 = vmatprep.subr.mxu0 0.0
    %459 = vmatpush2.msra.mxu0 0.0
    %460 = vmatprep.subr.mxu0 0.0
    %461 = vmatpush2.msra.mxu0 0.0
    %462 = vmatprep.subr.mxu0 0.0
    %463 = vmatpush2.msra.mxu0 0.0
    %464 = vmatprep.subr.mxu0 0.0
    %465 = vmatpush2.msra.mxu0 0.0
    %466 = vmatprep.subr.mxu0 0.0
    %467 = vmatpush2.msra.mxu0 0.0
    %468 = vmatprep.subr.mxu0 0.0
    %469 = vmatpush2.msra.mxu0 0.0
    %470 = vmatprep.subr.mxu0 0.0
    %471 = vmatpush2.msra.mxu0 0.0
    %472 = vmatprep.subr.mxu0 0.0
    %473 = vmatpush2.msra.mxu0 0.0
    %474 = vmatprep.subr.mxu0 0.0
    %475 = vmatpush2.msra.mxu0 0.0
    %476 = vmatprep.subr.mxu0 0.0
    %477 = vmatpush2.msra.mxu0 0.0
    %478 = vmatprep.subr.mxu0 0.0
    %479 = vmatpush2.msra.mxu0 0.0
    %480 = vmatprep.subr.mxu0 0.0
    %481 = vmatpush2.msra.mxu0 0.0
    %482 = vmatprep.subr.mxu0 0.0
    %483 = vmatpush2.msra.mxu0 0.0
    %484 = vmatprep.mubr.f32.mxu0 0.0
    %485 = vmatmul.mubr.f32.gmra.mxu0 %v390
    %v486 = vpop.f32.mrf.mxu0
    %v487 = vadd.f32 0.0, %v486
    %v488 = vpop.f32.mrf.mxu0
    %489 = vdwg.mxu0
    %490 = vmatprep.subr.mxu0 0.0
    %491 = vmatpush1.msra.mxu0 %v419
    %492 = vmatprep.subr.mxu0 0.0
    %493 = vmatpush1.msra.mxu0 %v418
    %494 = vmatprep.subr.mxu0 0.0
    %495 = vmatpush1.msra.mxu0 %v417
    %496 = vmatprep.subr.mxu0 0.0
    %497 = vmatpush1.msra.mxu0 %v416
    %498 = vmatprep.subr.mxu0 0.0
    %499 = vmatpush1.msra.mxu0 %v415
    %500 = vmatprep.subr.mxu0 0.0
    %501 = vmatpush1.msra.mxu0 %v414
    %502 = vmatprep.subr.mxu0 0.0
    %503 = vmatpush1.msra.mxu0 %v413
    %504 = vmatprep.subr.mxu0 0.0
    %505 = vmatpush1.msra.mxu0 %v412
    %506 = vmatprep.subr.mxu0 0.0
    %507 = vmatpush1.msra.mxu0 %v411
    %508 = vmatprep.subr.mxu0 0.0
    %509 = vmatpush1.msra.mxu0 %v410
    %510 = vmatprep.subr.mxu0 0.0
    %511 = vmatpush1.msra.mxu0 %v409
    %512 = vmatprep.subr.mxu0 0.0
    %513 = vmatpush1.msra.mxu0 %v408
    %514 = vmatprep.subr.mxu0 0.0
    %515 = vmatpush1.msra.mxu0 %v407
    %516 = vmatprep.subr.mxu0 0.0
    %517 = vmatpush1.msra.mxu0 %v406
    %518 = vmatprep.subr.mxu0 0.0
    %519 = vmatpush1.msra.mxu0 %v405
    %520 = vmatprep.subr.mxu0 0.0
    %521 = vmatpush1.msra.mxu0 %v404
    %522 = vmatprep.subr.mxu0 0.0
    %523 = vmatpush2.msra.mxu0 0.0
    %524 = vmatprep.subr.mxu0 0.0
    %525 = vmatpush2.msra.mxu0 0.0
    %526 = vmatprep.subr.mxu0 0.0
    %527 = vmatpush2.msra.mxu0 0.0
    %528 = vmatprep.subr.mxu0 0.0
    %529 = vmatpush2.msra.mxu0 0.0
    %530 = vmatprep.subr.mxu0 0.0
    %531 = vmatpush2.msra.mxu0 0.0
    %532 = vmatprep.subr.mxu0 0.0
    %533 = vmatpush2.msra.mxu0 0.0
    %534 = vmatprep.subr.mxu0 0.0
    %535 = vmatpush2.msra.mxu0 0.0
    %536 = vmatprep.subr.mxu0 0.0
    %537 = vmatpush2.msra.mxu0 0.0
    %538 = vmatprep.subr.mxu0 0.0
    %539 = vmatpush2.msra.mxu0 0.0
    %540 = vmatprep.subr.mxu0 0.0
    %541 = vmatpush2.msra.mxu0 0.0
    %542 = vmatprep.subr.mxu0 0.0
    %543 = vmatpush2.msra.mxu0 0.0
    %544 = vmatprep.subr.mxu0 0.0
    %545 = vmatpush2.msra.mxu0 0.0
    %546 = vmatprep.subr.mxu0 0.0
    %547 = vmatpush2.msra.mxu0 0.0
    %548 = vmatprep.subr.mxu0 0.0
    %549 = vmatpush2.msra.mxu0 0.0
    %550 = vmatprep.subr.mxu0 0.0
    %551 = vmatpush2.msra.mxu0 0.0
    %552 = vmatprep.subr.mxu0 0.0
    %553 = vmatpush2.msra.mxu0 0.0
    %554 = vmatprep.mubr.f32.mxu0 0.0
    %555 = vmatmul.mubr.f32.gmra.mxu0 %v403
    %v556 = vpop.f32.mrf.mxu0
    %v557 = vadd.f32 0.0, %v556
    %v558 = vpop.f32.mrf.mxu0
    %559 = vdwg.mxu0
    %v560 = vrcp.pop 512.0
    %v561 = vmul.f32 %v487, %v560
    %v562 = vmul.f32 %v557, %v560
    %v563 = vmul.f32 %v561, %v561
    %v564 = vsub.f32 %v562, %v563
    %v565 = vadd.f32 %v564, 1e-05
    %v566 = vrsqrt.pop %v565
    %v567 = vld [vmem:[%s8] sm:$0xff]
    %vm568 = vcmask 64512
    %v570 = vsel %vm568, %v561, 0
    %572 = vmatprep.subr.mxu0 0.0
    %573 = vmatpush1.msra.mxu0 0.0
    %574 = vmatprep.subr.mxu0 0.0
    %575 = vmatpush1.msra.mxu0 0.0
    %576 = vmatprep.subr.mxu0 0.0
    %577 = vmatpush1.msra.mxu0 0.0
    %578 = vmatprep.subr.mxu0 0.0
    %579 = vmatpush1.msra.mxu0 0.0
    %580 = vmatprep.subr.mxu0 0.0
    %581 = vmatpush1.msra.mxu0 0.0
    %582 = vmatprep.subr.mxu0 0.0
    %583 = vmatpush1.msra.mxu0 0.0
    %584 = vmatprep.subr.mxu0 0.0
    %585 = vmatpush1.msra.mxu0 0.0
    %586 = vmatprep.subr.mxu0 0.0
    %587 = vmatpush1.msra.mxu0 0.0
    %588 = vmatprep.subr.mxu0 0.0
    %589 = vmatpush1.msra.mxu0 0.0
    %590 = vmatprep.subr.mxu0 0.0
    %591 = vmatpush1.msra.mxu0 0.0
    %592 = vmatprep.subr.mxu0 0.0
    %593 = vmatpush1.msra.mxu0 0.0
    %594 = vmatprep.subr.mxu0 0.0
    %595 = vmatpush1.msra.mxu0 0.0
    %596 = vmatprep.subr.mxu0 0.0
    %597 = vmatpush1.msra.mxu0 0.0
    %598 = vmatprep.subr.mxu0 0.0
    %599 = vmatpush1.msra.mxu0 0.0
    %600 = vmatprep.subr.mxu0 0.0
    %601 = vmatpush1.msra.mxu0 0.0
    %602 = vmatprep.subr.mxu0 0.0
    %603 = vmatpush1.msra.mxu0 %v567
    %604 = vmatprep.subr.mxu0 0.0
    %605 = vmatpush2.msra.mxu0 0.0
    %606 = vmatprep.subr.mxu0 0.0
    %607 = vmatpush2.msra.mxu0 0.0
    %608 = vmatprep.subr.mxu0 0.0
    %609 = vmatpush2.msra.mxu0 0.0
    %610 = vmatprep.subr.mxu0 0.0
    %611 = vmatpush2.msra.mxu0 0.0
    %612 = vmatprep.subr.mxu0 0.0
    %613 = vmatpush2.msra.mxu0 0.0
    %614 = vmatprep.subr.mxu0 0.0
    %615 = vmatpush2.msra.mxu0 0.0
    %616 = vmatprep.subr.mxu0 0.0
    %617 = vmatpush2.msra.mxu0 0.0
    %618 = vmatprep.subr.mxu0 0.0
    %619 = vmatpush2.msra.mxu0 0.0
    %620 = vmatprep.subr.mxu0 0.0
    %621 = vmatpush2.msra.mxu0 0.0
    %622 = vmatprep.subr.mxu0 0.0
    %623 = vmatpush2.msra.mxu0 0.0
    %624 = vmatprep.subr.mxu0 0.0
    %625 = vmatpush2.msra.mxu0 0.0
    %626 = vmatprep.subr.mxu0 0.0
    %627 = vmatpush2.msra.mxu0 0.0
    %628 = vmatprep.subr.mxu0 0.0
    %629 = vmatpush2.msra.mxu0 0.0
    %630 = vmatprep.subr.mxu0 0.0
    %631 = vmatpush2.msra.mxu0 0.0
    %632 = vmatprep.subr.mxu0 0.0
    %633 = vmatpush2.msra.mxu0 0.0
    %634 = vmatprep.subr.mxu0 0.0
    %635 = vmatpush2.msra.mxu0 0.0
    %636 = vmatprep.mubr.f32.mxu0 0.0
    %637 = vmatmul.mubr.f32.gmra.mxu0 %v570
    %v638 = vpop.f32.mrf.mxu0
    %v639 = vadd.f32 0.0, %v638
    %v640 = vpop.f32.mrf.mxu0
    %641 = vdwg.mxu0
    %v643 = vsel %vm568, %v566, 0
    %645 = vmatprep.subr.mxu0 0.0
    %646 = vmatpush1.msra.mxu0 0.0
    %647 = vmatprep.subr.mxu0 0.0
    %648 = vmatpush1.msra.mxu0 0.0
    %649 = vmatprep.subr.mxu0 0.0
    %650 = vmatpush1.msra.mxu0 0.0
    %651 = vmatprep.subr.mxu0 0.0
    %652 = vmatpush1.msra.mxu0 0.0
    %653 = vmatprep.subr.mxu0 0.0
    %654 = vmatpush1.msra.mxu0 0.0
    %655 = vmatprep.subr.mxu0 0.0
    %656 = vmatpush1.msra.mxu0 0.0
    %657 = vmatprep.subr.mxu0 0.0
    %658 = vmatpush1.msra.mxu0 0.0
    %659 = vmatprep.subr.mxu0 0.0
    %660 = vmatpush1.msra.mxu0 0.0
    %661 = vmatprep.subr.mxu0 0.0
    %662 = vmatpush1.msra.mxu0 0.0
    %663 = vmatprep.subr.mxu0 0.0
    %664 = vmatpush1.msra.mxu0 0.0
    %665 = vmatprep.subr.mxu0 0.0
    %666 = vmatpush1.msra.mxu0 0.0
    %667 = vmatprep.subr.mxu0 0.0
    %668 = vmatpush1.msra.mxu0 0.0
    %669 = vmatprep.subr.mxu0 0.0
    %670 = vmatpush1.msra.mxu0 0.0
    %671 = vmatprep.subr.mxu0 0.0
    %672 = vmatpush1.msra.mxu0 0.0
    %673 = vmatprep.subr.mxu0 0.0
    %674 = vmatpush1.msra.mxu0 0.0
    %675 = vmatprep.subr.mxu0 0.0
    %676 = vmatpush1.msra.mxu0 %v567
    %677 = vmatprep.subr.mxu0 0.0
    %678 = vmatpush2.msra.mxu0 0.0
    %679 = vmatprep.subr.mxu0 0.0
    %680 = vmatpush2.msra.mxu0 0.0
    %681 = vmatprep.subr.mxu0 0.0
    %682 = vmatpush2.msra.mxu0 0.0
    %683 = vmatprep.subr.mxu0 0.0
    %684 = vmatpush2.msra.mxu0 0.0
    %685 = vmatprep.subr.mxu0 0.0
    %686 = vmatpush2.msra.mxu0 0.0
    %687 = vmatprep.subr.mxu0 0.0
    %688 = vmatpush2.msra.mxu0 0.0
    %689 = vmatprep.subr.mxu0 0.0
    %690 = vmatpush2.msra.mxu0 0.0
    %691 = vmatprep.subr.mxu0 0.0
    %692 = vmatpush2.msra.mxu0 0.0
    %693 = vmatprep.subr.mxu0 0.0
    %694 = vmatpush2.msra.mxu0 0.0
    %695 = vmatprep.subr.mxu0 0.0
    %696 = vmatpush2.msra.mxu0 0.0
    %697 = vmatprep.subr.mxu0 0.0
    %698 = vmatpush2.msra.mxu0 0.0
    %699 = vmatprep.subr.mxu0 0.0
    %700 = vmatpush2.msra.mxu0 0.0
    %701 = vmatprep.subr.mxu0 0.0
    %702 = vmatpush2.msra.mxu0 0.0
    %703 = vmatprep.subr.mxu0 0.0
    %704 = vmatpush2.msra.mxu0 0.0
    %705 = vmatprep.subr.mxu0 0.0
    %706 = vmatpush2.msra.mxu0 0.0
    %707 = vmatprep.subr.mxu0 0.0
    %708 = vmatpush2.msra.mxu0 0.0
    %709 = vmatprep.mubr.f32.mxu0 0.0
    %710 = vmatmul.mubr.f32.gmra.mxu0 %v643
    %v711 = vpop.f32.mrf.mxu0
    %v712 = vadd.f32 0.0, %v711
    %v713 = vpop.f32.mrf.mxu0
    %714 = vdwg.mxu0
    %v715 = vlaneseq
    %v716 = vshrl.u32 %v715, 7
    %v717 = vsub.s32 0, %v716
    %v718 = vrot.slane %v639, %v717
    %v719 = vsub.f32 %v378, %v718
    %v720 = vsub.f32 %v379, %v718
    %v721 = vsub.f32 %v380, %v718
    %v722 = vsub.f32 %v381, %v718
    %v723 = vlaneseq
    %v724 = vshrl.u32 %v723, 7
    %v725 = vsub.s32 0, %v724
    %v726 = vrot.slane %v712, %v725
    %v727 = vmul.f32 %v719, %v726
    %v728 = vmul.f32 %v720, %v726
    %v729 = vmul.f32 %v721, %v726
    %v730 = vmul.f32 %v722, %v726
    %v731 = vld [vmem:[%s2] sm:$0x1]
    %v733 = vlaneseq
    %v734 = vshrl.u32 %v733, 7
    %v735 = vsub.s32 0, %v734
    %v736 = vrot.slane %v731, %v735
    %v738 = vmul.f32 %v727, %v736
    %v739 = vmul.f32 %v728, %v736
    %v740 = vmul.f32 %v729, %v736
    %v741 = vmul.f32 %v730, %v736
    %v742 = vld [vmem:[%s3] sm:$0x1]
    %v744 = vlaneseq
    %v745 = vshrl.u32 %v744, 7
    %v746 = vsub.s32 0, %v745
    %v747 = vrot.slane %v742, %v746
    %v749 = vadd.f32 %v738, %v747
    %v750 = vadd.f32 %v739, %v747
    %v751 = vadd.f32 %v740, %v747
    %v752 = vadd.f32 %v741, %v747
    %v753 = vmax.f32 %v749, 0.0
    %v754 = vmax.f32 %v750, 0.0
    %v755 = vmax.f32 %v751, 0.0
    %v756 = vmax.f32 %v752, 0.0
    %757 = vst [vmem:[#allocation2] sm:$0x1] 0.0
    %758 = vst [vmem:[#allocation2 + $0x18] sm:$0x1] 0.0
    %759 = vst [vmem:[#allocation2 + $0x11] sm:$0x1] 0.0
    %760 = vst [vmem:[#allocation2 + $0x29] sm:$0x1] 0.0
    %761 = vst [vmem:[#allocation2 + $0x1] sm:$0xff] %v753
    %762 = vst [vmem:[#allocation2 + $0x9] sm:$0xff] %v754
    %763 = vst [vmem:[#allocation2 + $0x19] sm:$0xff] %v755
    %764 = vst [vmem:[#allocation2 + $0x21] sm:$0xff] %v756
    %v765 = vld [vmem:[#allocation2] sm:$0xff]
    %v766 = vld [vmem:[#allocation2 + $0x8] sm:$0xff]
    %v767 = vld [vmem:[#allocation2 + $0x18] sm:$0xff]
    %v768 = vld [vmem:[#allocation2 + $0x20] sm:$0xff]
    %v769 = vld [vmem:[#allocation6] sm:$0xff]
    %v770 = vld [vmem:[#allocation6 + $0x8] sm:$0xff]
    %v771 = vld [vmem:[#allocation6 + $0x10] sm:$0xff]
    %v772 = vld [vmem:[#allocation6 + $0x18] sm:$0xff]
    %v773 = vld [vmem:[#allocation6 + $0x20] sm:$0xff]
    %v774 = vld [vmem:[#allocation6 + $0x28] sm:$0xff]
    %v775 = vld [vmem:[#allocation6 + $0x30] sm:$0xff]
    %v776 = vld [vmem:[#allocation6 + $0x38] sm:$0xff]
    %v777 = vld [vmem:[#allocation6 + $0x40] sm:$0xff]
    %v778 = vld [vmem:[#allocation6 + $0x48] sm:$0xff]
    %v779 = vld [vmem:[#allocation6 + $0x50] sm:$0xff]
    %v780 = vld [vmem:[#allocation6 + $0x58] sm:$0xff]
    %v781 = vld [vmem:[#allocation6 + $0x60] sm:$0xff]
    %v782 = vld [vmem:[#allocation6 + $0x68] sm:$0xff]
    %v783 = vld [vmem:[#allocation6 + $0x70] sm:$0xff]
    %v784 = vld [vmem:[#allocation6 + $0x78] sm:$0xff]
    %v785 = vld [vmem:[#allocation2 + $0x1] sm:$0xff]
    %v786 = vld [vmem:[#allocation2 + $0x9] sm:$0xff]
    %v787 = vld [vmem:[#allocation2 + $0x19] sm:$0xff]
    %v788 = vld [vmem:[#allocation2 + $0x21] sm:$0xff]
    %s789 = scalar_lea.vmem [#allocation6], 128
    %v790 = vld [vmem:[%s789] sm:$0xff]
    %v791 = vld [vmem:[%s789 + $0x8] sm:$0xff]
    %v792 = vld [vmem:[%s789 + $0x10] sm:$0xff]
    %v793 = vld [vmem:[%s789 + $0x18] sm:$0xff]
    %v794 = vld [vmem:[%s789 + $0x20] sm:$0xff]
    %v795 = vld [vmem:[%s789 + $0x28] sm:$0xff]
    %v796 = vld [vmem:[%s789 + $0x30] sm:$0xff]
    %v797 = vld [vmem:[%s789 + $0x38] sm:$0xff]
    %v798 = vld [vmem:[%s789 + $0x40] sm:$0xff]
    %v799 = vld [vmem:[%s789 + $0x48] sm:$0xff]
    %v800 = vld [vmem:[%s789 + $0x50] sm:$0xff]
    %v801 = vld [vmem:[%s789 + $0x58] sm:$0xff]
    %v802 = vld [vmem:[%s789 + $0x60] sm:$0xff]
    %v803 = vld [vmem:[%s789 + $0x68] sm:$0xff]
    %v804 = vld [vmem:[%s789 + $0x70] sm:$0xff]
    %v805 = vld [vmem:[%s789 + $0x78] sm:$0xff]
    %806 = vmatprep.subr.mxu0 0.0
    %807 = vmatpush1.msra.mxu0 %v805
    %808 = vmatprep.subr.mxu0 0.0
    %809 = vmatpush1.msra.mxu0 %v804
    %810 = vmatprep.subr.mxu0 0.0
    %811 = vmatpush1.msra.mxu0 %v803
    %812 = vmatprep.subr.mxu0 0.0
    %813 = vmatpush1.msra.mxu0 %v802
    %814 = vmatprep.subr.mxu0 0.0
    %815 = vmatpush1.msra.mxu0 %v801
    %816 = vmatprep.subr.mxu0 0.0
    %817 = vmatpush1.msra.mxu0 %v800
    %818 = vmatprep.subr.mxu0 0.0
    %819 = vmatpush1.msra.mxu0 %v799
    %820 = vmatprep.subr.mxu0 0.0
    %821 = vmatpush1.msra.mxu0 %v798
    %822 = vmatprep.subr.mxu0 0.0
    %823 = vmatpush1.msra.mxu0 %v797
    %824 = vmatprep.subr.mxu0 0.0
    %825 = vmatpush1.msra.mxu0 %v796
    %826 = vmatprep.subr.mxu0 0.0
    %827 = vmatpush1.msra.mxu0 %v795
    %828 = vmatprep.subr.mxu0 0.0
    %829 = vmatpush1.msra.mxu0 %v794
    %830 = vmatprep.subr.mxu0 0.0
    %831 = vmatpush1.msra.mxu0 %v793
    %832 = vmatprep.subr.mxu0 0.0
    %833 = vmatpush1.msra.mxu0 %v792
    %834 = vmatprep.subr.mxu0 0.0
    %835 = vmatpush1.msra.mxu0 %v791
    %836 = vmatprep.subr.mxu0 0.0
    %837 = vmatpush1.msra.mxu0 %v790
    %838 = vmatprep.subr.mxu0 0.0
    %839 = vmatpush2.msra.mxu0 0.0
    %840 = vmatprep.subr.mxu0 0.0
    %841 = vmatpush2.msra.mxu0 0.0
    %842 = vmatprep.subr.mxu0 0.0
    %843 = vmatpush2.msra.mxu0 0.0
    %844 = vmatprep.subr.mxu0 0.0
    %845 = vmatpush2.msra.mxu0 0.0
    %846 = vmatprep.subr.mxu0 0.0
    %847 = vmatpush2.msra.mxu0 0.0
    %848 = vmatprep.subr.mxu0 0.0
    %849 = vmatpush2.msra.mxu0 0.0
    %850 = vmatprep.subr.mxu0 0.0
    %851 = vmatpush2.msra.mxu0 0.0
    %852 = vmatprep.subr.mxu0 0.0
    %853 = vmatpush2.msra.mxu0 0.0
    %854 = vmatprep.subr.mxu0 0.0
    %855 = vmatpush2.msra.mxu0 0.0
    %856 = vmatprep.subr.mxu0 0.0
    %857 = vmatpush2.msra.mxu0 0.0
    %858 = vmatprep.subr.mxu0 0.0
    %859 = vmatpush2.msra.mxu0 0.0
    %860 = vmatprep.subr.mxu0 0.0
    %861 = vmatpush2.msra.mxu0 0.0
    %862 = vmatprep.subr.mxu0 0.0
    %863 = vmatpush2.msra.mxu0 0.0
    %864 = vmatprep.subr.mxu0 0.0
    %865 = vmatpush2.msra.mxu0 0.0
    %866 = vmatprep.subr.mxu0 0.0
    %867 = vmatpush2.msra.mxu0 0.0
    %868 = vmatprep.subr.mxu0 0.0
    %869 = vmatpush2.msra.mxu0 0.0
    %870 = vmatprep.mubr.f32.mxu0 0.0
    %871 = vmatmul.mubr.f32.gmra.mxu0 %v785
    %v872 = vpop.f32.mrf.mxu0
    %v873 = vadd.f32 0.0, %v872
    %v874 = vpop.f32.mrf.mxu0
    %875 = vmatprep.mubr.f32.mxu0 0.0
    %876 = vmatmul.mubr.f32.gmra.mxu0 %v786
    %v877 = vpop.f32.mrf.mxu0
    %v878 = vadd.f32 0.0, %v877
    %v879 = vpop.f32.mrf.mxu0
    %880 = vmatprep.mubr.f32.mxu0 0.0
    %881 = vmatmul.mubr.f32.gmra.mxu0 %v787
    %v882 = vpop.f32.mrf.mxu0
    %v883 = vadd.f32 0.0, %v882
    %v884 = vpop.f32.mrf.mxu0
    %885 = vmatprep.mubr.f32.mxu0 0.0
    %886 = vmatmul.mubr.f32.gmra.mxu0 %v788
    %v887 = vpop.f32.mrf.mxu0
    %v888 = vadd.f32 0.0, %v887
    %v889 = vpop.f32.mrf.mxu0
    %890 = vdwg.mxu0
    %891 = vmatprep.subr.mxu0 0.0
    %892 = vmatpush1.msra.mxu0 %v784
    %893 = vmatprep.subr.mxu0 0.0
    %894 = vmatpush1.msra.mxu0 %v783
    %895 = vmatprep.subr.mxu0 0.0
    %896 = vmatpush1.msra.mxu0 %v782
    %897 = vmatprep.subr.mxu0 0.0
    %898 = vmatpush1.msra.mxu0 %v781
    %899 = vmatprep.subr.mxu0 0.0
    %900 = vmatpush1.msra.mxu0 %v780
    %901 = vmatprep.subr.mxu0 0.0
    %902 = vmatpush1.msra.mxu0 %v779
    %903 = vmatprep.subr.mxu0 0.0
    %904 = vmatpush1.msra.mxu0 %v778
    %905 = vmatprep.subr.mxu0 0.0
    %906 = vmatpush1.msra.mxu0 %v777
    %907 = vmatprep.subr.mxu0 0.0
    %908 = vmatpush1.msra.mxu0 %v776
    %909 = vmatprep.subr.mxu0 0.0
    %910 = vmatpush1.msra.mxu0 %v775
    %911 = vmatprep.subr.mxu0 0.0
    %912 = vmatpush1.msra.mxu0 %v774
    %913 = vmatprep.subr.mxu0 0.0
    %914 = vmatpush1.msra.mxu0 %v773
    %915 = vmatprep.subr.mxu0 0.0
    %916 = vmatpush1.msra.mxu0 %v772
    %917 = vmatprep.subr.mxu0 0.0
    %918 = vmatpush1.msra.mxu0 %v771
    %919 = vmatprep.subr.mxu0 0.0
    %920 = vmatpush1.msra.mxu0 %v770
    %921 = vmatprep.subr.mxu0 0.0
    %922 = vmatpush1.msra.mxu0 %v769
    %923 = vmatprep.subr.mxu0 0.0
    %924 = vmatpush2.msra.mxu0 0.0
    %925 = vmatprep.subr.mxu0 0.0
    %926 = vmatpush2.msra.mxu0 0.0
    %927 = vmatprep.subr.mxu0 0.0
    %928 = vmatpush2.msra.mxu0 0.0
    %929 = vmatprep.subr.mxu0 0.0
    %930 = vmatpush2.msra.mxu0 0.0
    %931 = vmatprep.subr.mxu0 0.0
    %932 = vmatpush2.msra.mxu0 0.0
    %933 = vmatprep.subr.mxu0 0.0
    %934 = vmatpush2.msra.mxu0 0.0
    %935 = vmatprep.subr.mxu0 0.0
    %936 = vmatpush2.msra.mxu0 0.0
    %937 = vmatprep.subr.mxu0 0.0
    %938 = vmatpush2.msra.mxu0 0.0
    %939 = vmatprep.subr.mxu0 0.0
    %940 = vmatpush2.msra.mxu0 0.0
    %941 = vmatprep.subr.mxu0 0.0
    %942 = vmatpush2.msra.mxu0 0.0
    %943 = vmatprep.subr.mxu0 0.0
    %944 = vmatpush2.msra.mxu0 0.0
    %945 = vmatprep.subr.mxu0 0.0
    %946 = vmatpush2.msra.mxu0 0.0
    %947 = vmatprep.subr.mxu0 0.0
    %948 = vmatpush2.msra.mxu0 0.0
    %949 = vmatprep.subr.mxu0 0.0
    %950 = vmatpush2.msra.mxu0 0.0
    %951 = vmatprep.subr.mxu0 0.0
    %952 = vmatpush2.msra.mxu0 0.0
    %953 = vmatprep.subr.mxu0 0.0
    %954 = vmatpush2.msra.mxu0 0.0
    %955 = vmatprep.mubr.f32.mxu0 0.0
    %956 = vmatmul.mubr.f32.gmra.mxu0 %v765
    %v957 = vpop.f32.mrf.mxu0
    %v958 = vadd.f32 %v873, %v957
    %v959 = vpop.f32.mrf.mxu0
    %960 = vmatprep.mubr.f32.mxu0 0.0
    %961 = vmatmul.mubr.f32.gmra.mxu0 %v766
    %v962 = vpop.f32.mrf.mxu0
    %v963 = vadd.f32 %v878, %v962
    %v964 = vpop.f32.mrf.mxu0
    %965 = vmatprep.mubr.f32.mxu0 0.0
    %966 = vmatmul.mubr.f32.gmra.mxu0 %v767
    %v967 = vpop.f32.mrf.mxu0
    %v968 = vadd.f32 %v883, %v967
    %v969 = vpop.f32.mrf.mxu0
    %970 = vmatprep.mubr.f32.mxu0 0.0
    %971 = vmatmul.mubr.f32.gmra.mxu0 %v768
    %v972 = vpop.f32.mrf.mxu0
    %v973 = vadd.f32 %v888, %v972
    %v974 = vpop.f32.mrf.mxu0
    %975 = vdwg.mxu0
    %v976 = vld [vmem:[#allocation2 + $0x2] sm:$0xff]
    %v977 = vld [vmem:[#allocation2 + $0xa] sm:$0xff]
    %v978 = vld [vmem:[#allocation2 + $0x1a] sm:$0xff]
    %v979 = vld [vmem:[#allocation2 + $0x22] sm:$0xff]
    %s980 = scalar_lea.vmem [#allocation6], 256
    %v981 = vld [vmem:[%s980] sm:$0xff]
    %v982 = vld [vmem:[%s980 + $0x8] sm:$0xff]
    %v983 = vld [vmem:[%s980 + $0x10] sm:$0xff]
    %v984 = vld [vmem:[%s980 + $0x18] sm:$0xff]
    %v985 = vld [vmem:[%s980 + $0x20] sm:$0xff]
    %v986 = vld [vmem:[%s980 + $0x28] sm:$0xff]
    %v987 = vld [vmem:[%s980 + $0x30] sm:$0xff]
    %v988 = vld [vmem:[%s980 + $0x38] sm:$0xff]
    %v989 = vld [vmem:[%s980 + $0x40] sm:$0xff]
    %v990 = vld [vmem:[%s980 + $0x48] sm:$0xff]
    %v991 = vld [vmem:[%s980 + $0x50] sm:$0xff]
    %v992 = vld [vmem:[%s980 + $0x58] sm:$0xff]
    %v993 = vld [vmem:[%s980 + $0x60] sm:$0xff]
    %v994 = vld [vmem:[%s980 + $0x68] sm:$0xff]
    %v995 = vld [vmem:[%s980 + $0x70] sm:$0xff]
    %v996 = vld [vmem:[%s980 + $0x78] sm:$0xff]
    %997 = vmatprep.subr.mxu0 0.0
    %998 = vmatpush1.msra.mxu0 %v996
    %999 = vmatprep.subr.mxu0 0.0
    %1000 = vmatpush1.msra.mxu0 %v995
    %1001 = vmatprep.subr.mxu0 0.0
    %1002 = vmatpush1.msra.mxu0 %v994
    %1003 = vmatprep.subr.mxu0 0.0
    %1004 = vmatpush1.msra.mxu0 %v993
    %1005 = vmatprep.subr.mxu0 0.0
    %1006 = vmatpush1.msra.mxu0 %v992
    %1007 = vmatprep.subr.mxu0 0.0
    %1008 = vmatpush1.msra.mxu0 %v991
    %1009 = vmatprep.subr.mxu0 0.0
    %1010 = vmatpush1.msra.mxu0 %v990
    %1011 = vmatprep.subr.mxu0 0.0
    %1012 = vmatpush1.msra.mxu0 %v989
    %1013 = vmatprep.subr.mxu0 0.0
    %1014 = vmatpush1.msra.mxu0 %v988
    %1015 = vmatprep.subr.mxu0 0.0
    %1016 = vmatpush1.msra.mxu0 %v987
    %1017 = vmatprep.subr.mxu0 0.0
    %1018 = vmatpush1.msra.mxu0 %v986
    %1019 = vmatprep.subr.mxu0 0.0
    %1020 = vmatpush1.msra.mxu0 %v985
    %1021 = vmatprep.subr.mxu0 0.0
    %1022 = vmatpush1.msra.mxu0 %v984
    %1023 = vmatprep.subr.mxu0 0.0
    %1024 = vmatpush1.msra.mxu0 %v983
    %1025 = vmatprep.subr.mxu0 0.0
    %1026 = vmatpush1.msra.mxu0 %v982
    %1027 = vmatprep.subr.mxu0 0.0
    %1028 = vmatpush1.msra.mxu0 %v981
    %1029 = vmatprep.subr.mxu0 0.0
    %1030 = vmatpush2.msra.mxu0 0.0
    %1031 = vmatprep.subr.mxu0 0.0
    %1032 = vmatpush2.msra.mxu0 0.0
    %1033 = vmatprep.subr.mxu0 0.0
    %1034 = vmatpush2.msra.mxu0 0.0
    %1035 = vmatprep.subr.mxu0 0.0
    %1036 = vmatpush2.msra.mxu0 0.0
    %1037 = vmatprep.subr.mxu0 0.0
    %1038 = vmatpush2.msra.mxu0 0.0
    %1039 = vmatprep.subr.mxu0 0.0
    %1040 = vmatpush2.msra.mxu0 0.0
    %1041 = vmatprep.subr.mxu0 0.0
    %1042 = vmatpush2.msra.mxu0 0.0
    %1043 = vmatprep.subr.mxu0 0.0
    %1044 = vmatpush2.msra.mxu0 0.0
    %1045 = vmatprep.subr.mxu0 0.0
    %1046 = vmatpush2.msra.mxu0 0.0
    %1047 = vmatprep.subr.mxu0 0.0
    %1048 = vmatpush2.msra.mxu0 0.0
    %1049 = vmatprep.subr.mxu0 0.0
    %1050 = vmatpush2.msra.mxu0 0.0
    %1051 = vmatprep.subr.mxu0 0.0
    %1052 = vmatpush2.msra.mxu0 0.0
    %1053 = vmatprep.subr.mxu0 0.0
    %1054 = vmatpush2.msra.mxu0 0.0
    %1055 = vmatprep.subr.mxu0 0.0
    %1056 = vmatpush2.msra.mxu0 0.0
    %1057 = vmatprep.subr.mxu0 0.0
    %1058 = vmatpush2.msra.mxu0 0.0
    %1059 = vmatprep.subr.mxu0 0.0
    %1060 = vmatpush2.msra.mxu0 0.0
    %1061 = vmatprep.mubr.f32.mxu0 0.0
    %1062 = vmatmul.mubr.f32.gmra.mxu0 %v976
    %v1063 = vpop.f32.mrf.mxu0
    %v1064 = vadd.f32 0.0, %v1063
    %v1065 = vpop.f32.mrf.mxu0
    %1066 = vmatprep.mubr.f32.mxu0 0.0
    %1067 = vmatmul.mubr.f32.gmra.mxu0 %v977
    %v1068 = vpop.f32.mrf.mxu0
    %v1069 = vadd.f32 0.0, %v1068
    %v1070 = vpop.f32.mrf.mxu0
    %1071 = vmatprep.mubr.f32.mxu0 0.0
    %1072 = vmatmul.mubr.f32.gmra.mxu0 %v978
    %v1073 = vpop.f32.mrf.mxu0
    %v1074 = vadd.f32 0.0, %v1073
    %v1075 = vpop.f32.mrf.mxu0
    %1076 = vmatprep.mubr.f32.mxu0 0.0
    %1077 = vmatmul.mubr.f32.gmra.mxu0 %v979
    %v1078 = vpop.f32.mrf.mxu0
    %v1079 = vadd.f32 0.0, %v1078
    %v1080 = vpop.f32.mrf.mxu0
    %1081 = vdwg.mxu0
    %v1082 = vadd.f32 %v958, %v1064
    %v1083 = vadd.f32 %v963, %v1069
    %v1084 = vadd.f32 %v968, %v1074
    %v1085 = vadd.f32 %v973, %v1079
    %v1086 = vadd.f32 %v1082, %v1083
    %v1087 = vadd.f32 %v1086, %v1084
    %v1088 = vadd.f32 %v1087, %v1085
    %v1089 = vrot.slane %v1088, 4
    %v1090 = vadd.f32 %v1088, %v1089
    %v1091 = vrot.slane %v1090, 2
    %v1092 = vadd.f32 %v1090, %v1091
    %v1093 = vrot.slane %v1092, 1
    %v1094 = vadd.f32 %v1092, %v1093
    %v1095 = vmul.f32 %v1082, %v1082
    %v1096 = vmul.f32 %v1083, %v1083
    %v1097 = vmul.f32 %v1084, %v1084
    %v1098 = vmul.f32 %v1085, %v1085
    %v1099 = vadd.f32 %v1095, %v1096
    %v1100 = vadd.f32 %v1099, %v1097
    %v1101 = vadd.f32 %v1100, %v1098
    %v1102 = vrot.slane %v1101, 4
    %v1103 = vadd.f32 %v1101, %v1102
    %v1104 = vrot.slane %v1103, 2
    %v1105 = vadd.f32 %v1103, %v1104
    %v1106 = vrot.slane %v1105, 1
    %v1107 = vadd.f32 %v1105, %v1106
    %v1108 = vld [vmem:[%s7] sm:$0xff]
    %v1109 = vld [vmem:[%s7 + $0x8] sm:$0xff]
    %v1110 = vld [vmem:[%s7 + $0x10] sm:$0xff]
    %v1111 = vld [vmem:[%s7 + $0x18] sm:$0xff]
    %v1112 = vld [vmem:[%s7 + $0x20] sm:$0xff]
    %v1113 = vld [vmem:[%s7 + $0x28] sm:$0xff]
    %v1114 = vld [vmem:[%s7 + $0x30] sm:$0xff]
    %v1115 = vld [vmem:[%s7 + $0x38] sm:$0xff]
    %v1116 = vld [vmem:[%s7 + $0x40] sm:$0xff]
    %v1117 = vld [vmem:[%s7 + $0x48] sm:$0xff]
    %v1118 = vld [vmem:[%s7 + $0x50] sm:$0xff]
    %v1119 = vld [vmem:[%s7 + $0x58] sm:$0xff]
    %v1120 = vld [vmem:[%s7 + $0x60] sm:$0xff]
    %v1121 = vld [vmem:[%s7 + $0x68] sm:$0xff]
    %v1122 = vld [vmem:[%s7 + $0x70] sm:$0xff]
    %v1123 = vld [vmem:[%s7 + $0x78] sm:$0xff]
    %1124 = vmatprep.subr.mxu0 0.0
    %1125 = vmatpush1.msra.mxu0 %v1123
    %1126 = vmatprep.subr.mxu0 0.0
    %1127 = vmatpush1.msra.mxu0 %v1122
    %1128 = vmatprep.subr.mxu0 0.0
    %1129 = vmatpush1.msra.mxu0 %v1121
    %1130 = vmatprep.subr.mxu0 0.0
    %1131 = vmatpush1.msra.mxu0 %v1120
    %1132 = vmatprep.subr.mxu0 0.0
    %1133 = vmatpush1.msra.mxu0 %v1119
    %1134 = vmatprep.subr.mxu0 0.0
    %1135 = vmatpush1.msra.mxu0 %v1118
    %1136 = vmatprep.subr.mxu0 0.0
    %1137 = vmatpush1.msra.mxu0 %v1117
    %1138 = vmatprep.subr.mxu0 0.0
    %1139 = vmatpush1.msra.mxu0 %v1116
    %1140 = vmatprep.subr.mxu0 0.0
    %1141 = vmatpush1.msra.mxu0 %v1115
    %1142 = vmatprep.subr.mxu0 0.0
    %1143 = vmatpush1.msra.mxu0 %v1114
    %1144 = vmatprep.subr.mxu0 0.0
    %1145 = vmatpush1.msra.mxu0 %v1113
    %1146 = vmatprep.subr.mxu0 0.0
    %1147 = vmatpush1.msra.mxu0 %v1112
    %1148 = vmatprep.subr.mxu0 0.0
    %1149 = vmatpush1.msra.mxu0 %v1111
    %1150 = vmatprep.subr.mxu0 0.0
    %1151 = vmatpush1.msra.mxu0 %v1110
    %1152 = vmatprep.subr.mxu0 0.0
    %1153 = vmatpush1.msra.mxu0 %v1109
    %1154 = vmatprep.subr.mxu0 0.0
    %1155 = vmatpush1.msra.mxu0 %v1108
    %1156 = vmatprep.subr.mxu0 0.0
    %1157 = vmatpush2.msra.mxu0 0.0
    %1158 = vmatprep.subr.mxu0 0.0
    %1159 = vmatpush2.msra.mxu0 0.0
    %1160 = vmatprep.subr.mxu0 0.0
    %1161 = vmatpush2.msra.mxu0 0.0
    %1162 = vmatprep.subr.mxu0 0.0
    %1163 = vmatpush2.msra.mxu0 0.0
    %1164 = vmatprep.subr.mxu0 0.0
    %1165 = vmatpush2.msra.mxu0 0.0
    %1166 = vmatprep.subr.mxu0 0.0
    %1167 = vmatpush2.msra.mxu0 0.0
    %1168 = vmatprep.subr.mxu0 0.0
    %1169 = vmatpush2.msra.mxu0 0.0
    %1170 = vmatprep.subr.mxu0 0.0
    %1171 = vmatpush2.msra.mxu0 0.0
    %1172 = vmatprep.subr.mxu0 0.0
    %1173 = vmatpush2.msra.mxu0 0.0
    %1174 = vmatprep.subr.mxu0 0.0
    %1175 = vmatpush2.msra.mxu0 0.0
    %1176 = vmatprep.subr.mxu0 0.0
    %1177 = vmatpush2.msra.mxu0 0.0
    %1178 = vmatprep.subr.mxu0 0.0
    %1179 = vmatpush2.msra.mxu0 0.0
    %1180 = vmatprep.subr.mxu0 0.0
    %1181 = vmatpush2.msra.mxu0 0.0
    %1182 = vmatprep.subr.mxu0 0.0
    %1183 = vmatpush2.msra.mxu0 0.0
    %1184 = vmatprep.subr.mxu0 0.0
    %1185 = vmatpush2.msra.mxu0 0.0
    %1186 = vmatprep.subr.mxu0 0.0
    %1187 = vmatpush2.msra.mxu0 0.0
    %1188 = vmatprep.mubr.f32.mxu0 0.0
    %1189 = vmatmul.mubr.f32.gmra.mxu0 %v1094
    %v1190 = vpop.f32.mrf.mxu0
    %v1191 = vadd.f32 0.0, %v1190
    %v1192 = vpop.f32.mrf.mxu0
    %1193 = vdwg.mxu0
    %1194 = vmatprep.subr.mxu0 0.0
    %1195 = vmatpush1.msra.mxu0 %v1123
    %1196 = vmatprep.subr.mxu0 0.0
    %1197 = vmatpush1.msra.mxu0 %v1122
    %1198 = vmatprep.subr.mxu0 0.0
    %1199 = vmatpush1.msra.mxu0 %v1121
    %1200 = vmatprep.subr.mxu0 0.0
    %1201 = vmatpush1.msra.mxu0 %v1120
    %1202 = vmatprep.subr.mxu0 0.0
    %1203 = vmatpush1.msra.mxu0 %v1119
    %1204 = vmatprep.subr.mxu0 0.0
    %1205 = vmatpush1.msra.mxu0 %v1118
    %1206 = vmatprep.subr.mxu0 0.0
    %1207 = vmatpush1.msra.mxu0 %v1117
    %1208 = vmatprep.subr.mxu0 0.0
    %1209 = vmatpush1.msra.mxu0 %v1116
    %1210 = vmatprep.subr.mxu0 0.0
    %1211 = vmatpush1.msra.mxu0 %v1115
    %1212 = vmatprep.subr.mxu0 0.0
    %1213 = vmatpush1.msra.mxu0 %v1114
    %1214 = vmatprep.subr.mxu0 0.0
    %1215 = vmatpush1.msra.mxu0 %v1113
    %1216 = vmatprep.subr.mxu0 0.0
    %1217 = vmatpush1.msra.mxu0 %v1112
    %1218 = vmatprep.subr.mxu0 0.0
    %1219 = vmatpush1.msra.mxu0 %v1111
    %1220 = vmatprep.subr.mxu0 0.0
    %1221 = vmatpush1.msra.mxu0 %v1110
    %1222 = vmatprep.subr.mxu0 0.0
    %1223 = vmatpush1.msra.mxu0 %v1109
    %1224 = vmatprep.subr.mxu0 0.0
    %1225 = vmatpush1.msra.mxu0 %v1108
    %1226 = vmatprep.subr.mxu0 0.0
    %1227 = vmatpush2.msra.mxu0 0.0
    %1228 = vmatprep.subr.mxu0 0.0
    %1229 = vmatpush2.msra.mxu0 0.0
    %1230 = vmatprep.subr.mxu0 0.0
    %1231 = vmatpush2.msra.mxu0 0.0
    %1232 = vmatprep.subr.mxu0 0.0
    %1233 = vmatpush2.msra.mxu0 0.0
    %1234 = vmatprep.subr.mxu0 0.0
    %1235 = vmatpush2.msra.mxu0 0.0
    %1236 = vmatprep.subr.mxu0 0.0
    %1237 = vmatpush2.msra.mxu0 0.0
    %1238 = vmatprep.subr.mxu0 0.0
    %1239 = vmatpush2.msra.mxu0 0.0
    %1240 = vmatprep.subr.mxu0 0.0
    %1241 = vmatpush2.msra.mxu0 0.0
    %1242 = vmatprep.subr.mxu0 0.0
    %1243 = vmatpush2.msra.mxu0 0.0
    %1244 = vmatprep.subr.mxu0 0.0
    %1245 = vmatpush2.msra.mxu0 0.0
    %1246 = vmatprep.subr.mxu0 0.0
    %1247 = vmatpush2.msra.mxu0 0.0
    %1248 = vmatprep.subr.mxu0 0.0
    %1249 = vmatpush2.msra.mxu0 0.0
    %1250 = vmatprep.subr.mxu0 0.0
    %1251 = vmatpush2.msra.mxu0 0.0
    %1252 = vmatprep.subr.mxu0 0.0
    %1253 = vmatpush2.msra.mxu0 0.0
    %1254 = vmatprep.subr.mxu0 0.0
    %1255 = vmatpush2.msra.mxu0 0.0
    %1256 = vmatprep.subr.mxu0 0.0
    %1257 = vmatpush2.msra.mxu0 0.0
    %1258 = vmatprep.mubr.f32.mxu0 0.0
    %1259 = vmatmul.mubr.f32.gmra.mxu0 %v1107
    %v1260 = vpop.f32.mrf.mxu0
    %v1261 = vadd.f32 0.0, %v1260
    %v1262 = vpop.f32.mrf.mxu0
    %1263 = vdwg.mxu0
    %v1264 = vmul.f32 %v1191, %v560
    %v1265 = vmul.f32 %v1261, %v560
    %v1266 = vmul.f32 %v1264, %v1264
    %v1267 = vsub.f32 %v1265, %v1266
    %v1268 = vadd.f32 %v1267, 1e-05
    %v1269 = vrsqrt.pop %v1268
    %v1270 = vld [vmem:[%s8] sm:$0xff]
    %v1272 = vsel %vm568, %v1264, 0
    %1274 = vmatprep.subr.mxu0 0.0
    %1275 = vmatpush1.msra.mxu0 0.0
    %1276 = vmatprep.subr.mxu0 0.0
    %1277 = vmatpush1.msra.mxu0 0.0
    %1278 = vmatprep.subr.mxu0 0.0
    %1279 = vmatpush1.msra.mxu0 0.0
    %1280 = vmatprep.subr.mxu0 0.0
    %1281 = vmatpush1.msra.mxu0 0.0
    %1282 = vmatprep.subr.mxu0 0.0
    %1283 = vmatpush1.msra.mxu0 0.0
    %1284 = vmatprep.subr.mxu0 0.0
    %1285 = vmatpush1.msra.mxu0 0.0
    %1286 = vmatprep.subr.mxu0 0.0
    %1287 = vmatpush1.msra.mxu0 0.0
    %1288 = vmatprep.subr.mxu0 0.0
    %1289 = vmatpush1.msra.mxu0 0.0
    %1290 = vmatprep.subr.mxu0 0.0
    %1291 = vmatpush1.msra.mxu0 0.0
    %1292 = vmatprep.subr.mxu0 0.0
    %1293 = vmatpush1.msra.mxu0 0.0
    %1294 = vmatprep.subr.mxu0 0.0
    %1295 = vmatpush1.msra.mxu0 0.0
    %1296 = vmatprep.subr.mxu0 0.0
    %1297 = vmatpush1.msra.mxu0 0.0
    %1298 = vmatprep.subr.mxu0 0.0
    %1299 = vmatpush1.msra.mxu0 0.0
    %1300 = vmatprep.subr.mxu0 0.0
    %1301 = vmatpush1.msra.mxu0 0.0
    %1302 = vmatprep.subr.mxu0 0.0
    %1303 = vmatpush1.msra.mxu0 0.0
    %1304 = vmatprep.subr.mxu0 0.0
    %1305 = vmatpush1.msra.mxu0 %v1270
    %1306 = vmatprep.subr.mxu0 0.0
    %1307 = vmatpush2.msra.mxu0 0.0
    %1308 = vmatprep.subr.mxu0 0.0
    %1309 = vmatpush2.msra.mxu0 0.0
    %1310 = vmatprep.subr.mxu0 0.0
    %1311 = vmatpush2.msra.mxu0 0.0
    %1312 = vmatprep.subr.mxu0 0.0
    %1313 = vmatpush2.msra.mxu0 0.0
    %1314 = vmatprep.subr.mxu0 0.0
    %1315 = vmatpush2.msra.mxu0 0.0
    %1316 = vmatprep.subr.mxu0 0.0
    %1317 = vmatpush2.msra.mxu0 0.0
    %1318 = vmatprep.subr.mxu0 0.0
    %1319 = vmatpush2.msra.mxu0 0.0
    %1320 = vmatprep.subr.mxu0 0.0
    %1321 = vmatpush2.msra.mxu0 0.0
    %1322 = vmatprep.subr.mxu0 0.0
    %1323 = vmatpush2.msra.mxu0 0.0
    %1324 = vmatprep.subr.mxu0 0.0
    %1325 = vmatpush2.msra.mxu0 0.0
    %1326 = vmatprep.subr.mxu0 0.0
    %1327 = vmatpush2.msra.mxu0 0.0
    %1328 = vmatprep.subr.mxu0 0.0
    %1329 = vmatpush2.msra.mxu0 0.0
    %1330 = vmatprep.subr.mxu0 0.0
    %1331 = vmatpush2.msra.mxu0 0.0
    %1332 = vmatprep.subr.mxu0 0.0
    %1333 = vmatpush2.msra.mxu0 0.0
    %1334 = vmatprep.subr.mxu0 0.0
    %1335 = vmatpush2.msra.mxu0 0.0
    %1336 = vmatprep.subr.mxu0 0.0
    %1337 = vmatpush2.msra.mxu0 0.0
    %1338 = vmatprep.mubr.f32.mxu0 0.0
    %1339 = vmatmul.mubr.f32.gmra.mxu0 %v1272
    %v1340 = vpop.f32.mrf.mxu0
    %v1341 = vadd.f32 0.0, %v1340
    %v1342 = vpop.f32.mrf.mxu0
    %1343 = vdwg.mxu0
    %v1345 = vsel %vm568, %v1269, 0
    %1347 = vmatprep.subr.mxu0 0.0
    %1348 = vmatpush1.msra.mxu0 0.0
    %1349 = vmatprep.subr.mxu0 0.0
    %1350 = vmatpush1.msra.mxu0 0.0
    %1351 = vmatprep.subr.mxu0 0.0
    %1352 = vmatpush1.msra.mxu0 0.0
    %1353 = vmatprep.subr.mxu0 0.0
    %1354 = vmatpush1.msra.mxu0 0.0
    %1355 = vmatprep.subr.mxu0 0.0
    %1356 = vmatpush1.msra.mxu0 0.0
    %1357 = vmatprep.subr.mxu0 0.0
    %1358 = vmatpush1.msra.mxu0 0.0
    %1359 = vmatprep.subr.mxu0 0.0
    %1360 = vmatpush1.msra.mxu0 0.0
    %1361 = vmatprep.subr.mxu0 0.0
    %1362 = vmatpush1.msra.mxu0 0.0
    %1363 = vmatprep.subr.mxu0 0.0
    %1364 = vmatpush1.msra.mxu0 0.0
    %1365 = vmatprep.subr.mxu0 0.0
    %1366 = vmatpush1.msra.mxu0 0.0
    %1367 = vmatprep.subr.mxu0 0.0
    %1368 = vmatpush1.msra.mxu0 0.0
    %1369 = vmatprep.subr.mxu0 0.0
    %1370 = vmatpush1.msra.mxu0 0.0
    %1371 = vmatprep.subr.mxu0 0.0
    %1372 = vmatpush1.msra.mxu0 0.0
    %1373 = vmatprep.subr.mxu0 0.0
    %1374 = vmatpush1.msra.mxu0 0.0
    %1375 = vmatprep.subr.mxu0 0.0
    %1376 = vmatpush1.msra.mxu0 0.0
    %1377 = vmatprep.subr.mxu0 0.0
    %1378 = vmatpush1.msra.mxu0 %v1270
    %1379 = vmatprep.subr.mxu0 0.0
    %1380 = vmatpush2.msra.mxu0 0.0
    %1381 = vmatprep.subr.mxu0 0.0
    %1382 = vmatpush2.msra.mxu0 0.0
    %1383 = vmatprep.subr.mxu0 0.0
    %1384 = vmatpush2.msra.mxu0 0.0
    %1385 = vmatprep.subr.mxu0 0.0
    %1386 = vmatpush2.msra.mxu0 0.0
    %1387 = vmatprep.subr.mxu0 0.0
    %1388 = vmatpush2.msra.mxu0 0.0
    %1389 = vmatprep.subr.mxu0 0.0
    %1390 = vmatpush2.msra.mxu0 0.0
    %1391 = vmatprep.subr.mxu0 0.0
    %1392 = vmatpush2.msra.mxu0 0.0
    %1393 = vmatprep.subr.mxu0 0.0
    %1394 = vmatpush2.msra.mxu0 0.0
    %1395 = vmatprep.subr.mxu0 0.0
    %1396 = vmatpush2.msra.mxu0 0.0
    %1397 = vmatprep.subr.mxu0 0.0
    %1398 = vmatpush2.msra.mxu0 0.0
    %1399 = vmatprep.subr.mxu0 0.0
    %1400 = vmatpush2.msra.mxu0 0.0
    %1401 = vmatprep.subr.mxu0 0.0
    %1402 = vmatpush2.msra.mxu0 0.0
    %1403 = vmatprep.subr.mxu0 0.0
    %1404 = vmatpush2.msra.mxu0 0.0
    %1405 = vmatprep.subr.mxu0 0.0
    %1406 = vmatpush2.msra.mxu0 0.0
    %1407 = vmatprep.subr.mxu0 0.0
    %1408 = vmatpush2.msra.mxu0 0.0
    %1409 = vmatprep.subr.mxu0 0.0
    %1410 = vmatpush2.msra.mxu0 0.0
    %1411 = vmatprep.mubr.f32.mxu0 0.0
    %1412 = vmatmul.mubr.f32.gmra.mxu0 %v1345
    %v1413 = vpop.f32.mrf.mxu0
    %v1414 = vadd.f32 0.0, %v1413
    %v1415 = vpop.f32.mrf.mxu0
    %1416 = vdwg.mxu0
    %v1417 = vlaneseq
    %v1418 = vshrl.u32 %v1417, 7
    %v1419 = vsub.s32 0, %v1418
    %v1420 = vrot.slane %v1341, %v1419
    %v1421 = vsub.f32 %v1082, %v1420
    %v1422 = vsub.f32 %v1083, %v1420
    %v1423 = vsub.f32 %v1084, %v1420
    %v1424 = vsub.f32 %v1085, %v1420
    %v1425 = vlaneseq
    %v1426 = vshrl.u32 %v1425, 7
    %v1427 = vsub.s32 0, %v1426
    %v1428 = vrot.slane %v1414, %v1427
    %v1429 = vmul.f32 %v1421, %v1428
    %v1430 = vmul.f32 %v1422, %v1428
    %v1431 = vmul.f32 %v1423, %v1428
    %v1432 = vmul.f32 %v1424, %v1428
    %v1433 = vld [vmem:[%s5] sm:$0x1]
    %v1435 = vlaneseq
    %v1436 = vshrl.u32 %v1435, 7
    %v1437 = vsub.s32 0, %v1436
    %v1438 = vrot.slane %v1433, %v1437
    %v1440 = vmul.f32 %v1429, %v1438
    %v1441 = vmul.f32 %v1430, %v1438
    %v1442 = vmul.f32 %v1431, %v1438
    %v1443 = vmul.f32 %v1432, %v1438
    %v1444 = vld [vmem:[%s6] sm:$0x1]
    %v1446 = vlaneseq
    %v1447 = vshrl.u32 %v1446, 7
    %v1448 = vsub.s32 0, %v1447
    %v1449 = vrot.slane %v1444, %v1448
    %v1451 = vadd.f32 %v1440, %v1449
    %v1452 = vadd.f32 %v1441, %v1449
    %v1453 = vadd.f32 %v1442, %v1449
    %v1454 = vadd.f32 %v1443, %v1449
    %v1455 = vld [vmem:[%s0 + $0x1] sm:$0xff]
    %v1456 = vld [vmem:[%s0 + $0x9] sm:$0xff]
    %v1457 = vld [vmem:[%s0 + $0x19] sm:$0xff]
    %v1458 = vld [vmem:[%s0 + $0x21] sm:$0xff]
    %v1459 = vadd.f32 %v1451, %v1455
    %v1460 = vadd.f32 %v1452, %v1456
    %v1461 = vadd.f32 %v1453, %v1457
    %v1462 = vadd.f32 %v1454, %v1458
    %v1463 = vmax.f32 %v1459, 0.0
    %v1464 = vmax.f32 %v1460, 0.0
    %v1465 = vmax.f32 %v1461, 0.0
    %v1466 = vmax.f32 %v1462, 0.0
    %1467 = vst [vmem:[#allocation8] sm:$0xff] %v1463
    %1468 = vst [vmem:[#allocation8 + $0x8] sm:$0xff] %v1464
    %1469 = vst [vmem:[#allocation8 + $0x10] sm:$0xff] %v1465
    %1470 = vst [vmem:[#allocation8 + $0x18] sm:$0xff] %v1466
    // Predicated region
    $region46: #{tpu_custom_call.1} parent=1 // pred_check
      _
    $region47: #{tpu_custom_call.1} parent=1 // pred_check_branch
      %1472 = sbr.rel (0) target = $region49
    $region48: #{tpu_custom_call.1} parent=1 // pred_region
      %s1474 = ssub.s32 512, 512
      %1475 = vsyncadd [#allocation5], %s1474
      %s1476 = sshll.u32 [#allocation8], 4
      %s1477 = int_to_ptr.vmem [resolvable:$true] %s1476
      %1482 = dma.vmem_to_hbm [thread:$0]  %s1477, 512, %s9, [#allocation5], 128, 128, 8
    $region49: #{tpu_custom_call.1} parent=1 // pred_fallthru
      _
    // Predicated region
    $region50: #{tpu_custom_call.1} parent=1 // pred_check
      _
    $region51: #{tpu_custom_call.1} parent=1 // pred_check_branch
      %1484 = sbr.rel (0) target = $region53
    $region52: #{tpu_custom_call.1} parent=1 // pred_region
      %1485 = dma.done [#allocation5], 512
    $region53: #{tpu_custom_call.1} parent=1 // pred_fallthru
      _
    %1486 = vsyncpa [#allocation4], 1
    %1487 = vsyncpa [#allocation7], 1
    %1488 = vsyncpa [#allocation5], 1

</llo_original>
